<compile_context>
chip_gen: v7x
topology: tpu7x:2x2x1
jax: 0.10.0
libtpu: 0.0.40
codegen_flags: <defaults>
</compile_context>

<pallas_src>
import functools

import numpy as np

import jax
import jax.numpy as jnp
from jax.experimental import pallas as pl
from jax.experimental.pallas import tpu as pltpu


# ---------------------------------------------------------------------------
# Tiny 0/1 masks (built once per spatial size in numpy; a few KB total).
# Lane index inside one image is p = h*W + w; images are contiguous in lanes.
# ---------------------------------------------------------------------------
def _conv_tap_masks(H, W, nb, level):
    """(9, 1, nb*H*W) f32: mask[t]=1 where tap t=(kh,kw) reads an in-bounds
    source on the level-`level` grid (level 0: full res, level 1: pooled grid
    stored sparsely on even-even lanes)."""
    HW = H * W
    h = np.arange(HW) // W
    w = np.arange(HW) % W
    s = 1 << level
    Hl, Wl = H // s, W // s
    hl, wl = h // s, w // s
    m = np.zeros((9, 1, HW), np.float32)
    for kh in range(3):
        for kw in range(3):
            dh, dw = kh - 1, kw - 1
            ok = ((hl + dh >= 0) & (hl + dh < Hl) &
                  (wl + dw >= 0) & (wl + dw < Wl))
            m[kh * 3 + kw, 0] = ok.astype(np.float32)
    return np.tile(m, (1, 1, nb))


def _sparsity_mask(H, W, nb, stride):
    """(1, nb*H*W) f32: 1 on lanes whose (h, w) are both multiples of `stride`."""
    HW = H * W
    h = np.arange(HW) // W
    w = np.arange(HW) % W
    m = ((h % stride == 0) & (w % stride == 0)).astype(np.float32)
    return np.tile(m.reshape(1, HW), (1, nb))


# ---------------------------------------------------------------------------
# Fused forward-pass kernel.  One grid step = Nb images; activations stay in
# VMEM/vregs in (C, Nb*H*W) layout for the whole pipeline.
# ---------------------------------------------------------------------------
def _autoencoder_kernel(x_ref, w1_ref, b1_ref, m1_ref,
                        w2_ref, b2_ref, m2_ref,
                        wt1_ref, bt1_ref, sp2_ref,
                        wt2_ref, bt2_ref, sp1_ref,
                        o_ref, *, H, W, Nb):
    f32 = jnp.float32
    dot = functools.partial(jnp.dot, preferred_element_type=f32)
    L = Nb * H * W                                   # lane width (mult. of 128)

    def shifted_stack_3x3(a, step, msk_ref):
        # a: (C, L).  Returns (9*C, L): tap-major stacked shifted copies with
        # the zero-pad halo applied via boundary masks.  `step` is the lane
        # distance between neighbouring pixels on this grid level.
        parts = []
        for kh in range(3):
            for kw in range(3):
                dh, dw = kh - 1, kw - 1
                s = (-(dh * W + dw) * step) % L
                sa = pltpu.roll(a, shift=s, axis=1) if s else a
                t = kh * 3 + kw
                if t != 4:                           # centre tap: mask == 1
                    sa = sa * msk_ref[t]
                parts.append(sa)
        return jnp.concatenate(parts, axis=0)

    def window_max_2x2(a, step):
        # Elementwise max over the 2x2 window {0, step, step*W, step*(W+1)}.
        # Result is valid on lanes whose (h, w) are multiples of 2*step.
        m = jnp.maximum(a, pltpu.roll(a, shift=(-step) % L, axis=1))
        return jnp.maximum(m, pltpu.roll(m, shift=(-step * W) % L, axis=1))

    def upsample_stack(a, step):
        # a: (C, L) zero outside its valid lanes.  Returns (4*C, L): the 4
        # rolled copies for the stride-2 transposed-conv taps, tap-major.
        parts = []
        for kh in range(2):
            for kw in range(2):
                s = (kh * W + kw) * step
                parts.append(pltpu.roll(a, shift=s, axis=1) if s else a)
        return jnp.concatenate(parts, axis=0)

    x = x_ref[...]                                           # (Cin_p, L)

    # -------- encoder ------------------------------------------------------
    # conv1 3x3 pad=1 + ReLU                                   -> (16, L)
    y = jnp.maximum(dot(w1_ref[...], shifted_stack_3x3(x, 1, m1_ref))
                    + b1_ref[...], 0.0)
    # maxpool 2x2 stride 2 (kept sparse on even-even lanes)
    y = window_max_2x2(y, 1)
    # conv2 3x3 pad=1 + ReLU on the pooled grid                -> (Cp2, L)
    y = jnp.maximum(dot(w2_ref[...], shifted_stack_3x3(y, 2, m2_ref))
                    + b2_ref[...], 0.0)
    # maxpool 2x2 stride 2 (valid on lanes with h%4==0, w%4==0)
    y = window_max_2x2(y, 2)

    # -------- decoder ------------------------------------------------------
    # t_conv1 2x2 stride 2 + ReLU                              -> (16, L)
    y = y * sp2_ref[...]                                     # zero garbage lanes
    y = jnp.maximum(dot(wt1_ref[...], upsample_stack(y, 2))
                    + bt1_ref[...], 0.0)
    # t_conv2 2x2 stride 2 + sigmoid                           -> (Co, L) dense
    y = y * sp1_ref[...]
    z = dot(wt2_ref[...], upsample_stack(y, 1)) + bt2_ref[...]
    o_ref[...] = pl.reciprocal(1.0 + jnp.exp(-z), approx=False).astype(o_ref.dtype)


# ---------------------------------------------------------------------------
# Public wrapper (PyTorch-compatible NCHW interface, PyTorch weight layouts).
# ---------------------------------------------------------------------------
def conv_autoencoder_forward(x_nchw, params):
    N, Cin, H, W = x_nchw.shape
    assert H % 4 == 0 and W % 4 == 0
    HW = H * W

    C1 = params["conv1_w"].shape[0]      # 16
    C2 = params["conv2_w"].shape[0]      # 4
    C3 = params["tconv1_w"].shape[1]     # 16
    Co = params["tconv2_w"].shape[1]     # 3

    def r8(c):                           # round channels up to a sublane tile
        return max(8, -(-c // 8) * 8)

    Cin_p, C2_p = r8(Cin), r8(C2)

    # Images per grid step (folded into the lane axis).  Keep >=2 grid steps
    # when possible so both v7x TensorCores get work; cap lanes per step.
    Nb = max(1, min(4, N // 2))
    while N % Nb:
        Nb -= 1
    L = Nb * HW

    # ---- (C, lanes) layout; channel padding so all sublane concats align ---
    x = x_nchw.reshape(N, Cin, HW)
    x = jnp.pad(x, ((0, 0), (0, Cin_p - Cin), (0, 0)))
    x = x.transpose(1, 0, 2).reshape(Cin_p, N * HW)

    # conv weights OIHW -> (Cout, 9*Cin_p) tap-major; tconv IOHW -> (Cout, 4*Cin_p)
    w1 = jnp.pad(params["conv1_w"], ((0, 0), (0, Cin_p - Cin), (0, 0), (0, 0)))
    w1 = w1.transpose(0, 2, 3, 1).reshape(C1, 9 * Cin_p)
    b1 = params["conv1_b"].reshape(C1, 1)

    w2 = jnp.pad(params["conv2_w"], ((0, C2_p - C2), (0, 0), (0, 0), (0, 0)))
    w2 = w2.transpose(0, 2, 3, 1).reshape(C2_p, 9 * C1)
    b2 = jnp.pad(params["conv2_b"], (0, C2_p - C2)).reshape(C2_p, 1)

    wt1 = jnp.pad(params["tconv1_w"], ((0, C2_p - C2), (0, 0), (0, 0), (0, 0)))
    wt1 = wt1.transpose(1, 2, 3, 0).reshape(C3, 4 * C2_p)
    bt1 = params["tconv1_b"].reshape(C3, 1)

    wt2 = params["tconv2_w"].transpose(1, 2, 3, 0).reshape(Co, 4 * C3)
    bt2 = params["tconv2_b"].reshape(Co, 1)

    # Tiny constant masks (~30 KB total at 16x16).
    m1 = jnp.asarray(_conv_tap_masks(H, W, Nb, level=0))    # (9, 1, L)
    m2 = jnp.asarray(_conv_tap_masks(H, W, Nb, level=1))    # (9, 1, L)
    sp2 = jnp.asarray(_sparsity_mask(H, W, Nb, 4))          # (1, L)
    sp1 = jnp.asarray(_sparsity_mask(H, W, Nb, 2))          # (1, L)

    def rep(a):                          # grid-invariant (replicated) operand
        zeros = (0,) * a.ndim
        return pl.BlockSpec(a.shape, lambda n, _z=zeros: _z)

    kernel = functools.partial(_autoencoder_kernel, H=H, W=W, Nb=Nb)

    out_lanes = pl.pallas_call(
        kernel,
        out_shape=jax.ShapeDtypeStruct((Co, N * HW), x_nchw.dtype),
        grid=(N // Nb,),
        in_specs=[
            pl.BlockSpec((Cin_p, L), lambda n: (0, n)),
            rep(w1), rep(b1), rep(m1),
            rep(w2), rep(b2), rep(m2),
            rep(wt1), rep(bt1), rep(sp2),
            rep(wt2), rep(bt2), rep(sp1),
        ],
        out_specs=pl.BlockSpec((Co, L), lambda n: (0, n)),
        compiler_params=pltpu.CompilerParams(
            dimension_semantics=("parallel",)),   # batch blocks are independent
    )(x, w1, b1, m1, w2, b2, m2, wt1, bt1, sp2, wt2, bt2, sp1)

    # (Co, N*HW) -> NCHW.
    return out_lanes.reshape(Co, N, HW).transpose(1, 0, 2).reshape(N, Co, H, W)


# ---------------------------------------------------------------------------
# Plain-JAX reference of the same PyTorch module (validation only).
# ---------------------------------------------------------------------------
def _reference_forward(x, params):
    hp = jax.lax.Precision.HIGHEST

    def conv3x3(x, w, b):                       # w: (Cout, Cin, 3, 3)
        N, Ci, H, W = x.shape
        xp = jnp.pad(x, ((0, 0), (0, 0), (1, 1), (1, 1)))
        acc = jnp.zeros((N, w.shape[0], H, W), jnp.float32)
        for dh in range(3):
            for dw in range(3):
                acc = acc + jnp.einsum("nchw,oc->nohw",
                                       xp[:, :, dh:dh + H, dw:dw + W],
                                       w[:, :, dh, dw], precision=hp)
        return acc + b[None, :, None, None]

    def pool(x):
        N, C, H, W = x.shape
        return x.reshape(N, C, H // 2, 2, W // 2, 2).max(axis=(3, 5))

    def tconv2x2(x, w, b):                      # w: (Cin, Cout, 2, 2)
        N, Ci, H, W = x.shape
        y = jnp.einsum("nchw,cokl->nohwkl", x, w, precision=hp)
        y = y.transpose(0, 1, 2, 4, 3, 5).reshape(N, w.shape[1], 2 * H, 2 * W)
        return y + b[None, :, None, None]

    y = jax.nn.relu(conv3x3(x, params["conv1_w"], params["conv1_b"]))
    y = pool(y)
    y = jax.nn.relu(conv3x3(y, params["conv2_w"], params["conv2_b"]))
    y = pool(y)
    y = jax.nn.relu(tconv2x2(y, params["tconv1_w"], params["tconv1_b"]))
    y = jax.nn.sigmoid(tconv2x2(y, params["tconv2_w"], params["tconv2_b"]))
    return y


def init_params(key, channels):
    # Deterministic synthetic init (uniform +-1/sqrt(fan_in)); PyTorch layouts:
    # Conv2d weight OIHW, ConvTranspose2d weight IOHW, biases (Cout,).
    ks = jax.random.split(key, 8)

    def u(k, shape, fan_in):
        bound = 1.0 / float(fan_in) ** 0.5
        return jax.random.uniform(k, shape, jnp.float32, -bound, bound)

    return {
        "conv1_w": u(ks[0], (16, channels, 3, 3), channels * 9),
        "conv1_b": u(ks[1], (16,), channels * 9),
        "conv2_w": u(ks[2], (4, 16, 3, 3), 16 * 9),
        "conv2_b": u(ks[3], (4,), 16 * 9),
        "tconv1_w": u(ks[4], (4, 16, 2, 2), 4 * 4),
        "tconv1_b": u(ks[5], (16,), 4 * 4),
        "tconv2_w": u(ks[6], (16, 3, 2, 2), 16 * 4),
        "tconv2_b": u(ks[7], (3,), 16 * 4),
    }


if __name__ == "__main__":
    key = jax.random.PRNGKey(0)
    kx, kp = jax.random.split(key)

    channels = 4
    x = jax.random.normal(kx, (2, channels, 16, 16), jnp.float32)   # NCHW
    params = init_params(kp, channels)

    fwd = jax.jit(conv_autoencoder_forward)
    out = fwd(x, params)
    jax.block_until_ready(out)

    assert out.shape == (2, 3, 16, 16), out.shape
    assert out.dtype == jnp.float32

    ref = jax.jit(_reference_forward)(x, params)
    err = float(jnp.max(jnp.abs(out - ref)))
    assert err < 1e-3, f"max abs error vs reference: {err}"
    assert bool(jnp.all((out >= 0.0) & (out <= 1.0)))   # sigmoid output range
    print("KERNEL_OK")
</pallas_src>

<mosaic_0001>
module attributes {stable_mosaic.version = 11 : i64} {
  func.func @_autoencoder_kernel(%arg0: i32, %arg1: memref<8x256xf32, #tpu.memory_space<vmem>>, %arg2: memref<16x72xf32, #tpu.memory_space<vmem>>, %arg3: memref<16x1xf32, #tpu.memory_space<vmem>>, %arg4: memref<9x1x256xf32, #tpu.memory_space<vmem>>, %arg5: memref<8x144xf32, #tpu.memory_space<vmem>>, %arg6: memref<8x1xf32, #tpu.memory_space<vmem>>, %arg7: memref<9x1x256xf32, #tpu.memory_space<vmem>>, %arg8: memref<16x32xf32, #tpu.memory_space<vmem>>, %arg9: memref<16x1xf32, #tpu.memory_space<vmem>>, %arg10: memref<1x256xf32, #tpu.memory_space<vmem>>, %arg11: memref<3x64xf32, #tpu.memory_space<vmem>>, %arg12: memref<3x1xf32, #tpu.memory_space<vmem>>, %arg13: memref<1x256xf32, #tpu.memory_space<vmem>>, %arg14: memref<3x256xf32, #tpu.memory_space<vmem>>) attributes {dimension_semantics = [#tpu.dimension_semantics<parallel>], iteration_bounds = array<i64: 2>, scalar_prefetch = 0 : i64, scratch_operands = 0 : i64, tpu.core_type = #tpu.core_type<tc>, window_params = [{transform_indices = @transform_0, window_bounds = array<i64: 8, 256>}, {pipeline_mode = #tpu.pipeline_mode<synchronous>, transform_indices = @transform_1, window_bounds = array<i64: 16, 72>}, {pipeline_mode = #tpu.pipeline_mode<synchronous>, transform_indices = @transform_2, window_bounds = array<i64: 16, 1>}, {pipeline_mode = #tpu.pipeline_mode<synchronous>, transform_indices = @transform_3, window_bounds = array<i64: 9, 1, 256>}, {pipeline_mode = #tpu.pipeline_mode<synchronous>, transform_indices = @transform_4, window_bounds = array<i64: 8, 144>}, {pipeline_mode = #tpu.pipeline_mode<synchronous>, transform_indices = @transform_5, window_bounds = array<i64: 8, 1>}, {pipeline_mode = #tpu.pipeline_mode<synchronous>, transform_indices = @transform_6, window_bounds = array<i64: 9, 1, 256>}, {pipeline_mode = #tpu.pipeline_mode<synchronous>, transform_indices = @transform_7, window_bounds = array<i64: 16, 32>}, {pipeline_mode = #tpu.pipeline_mode<synchronous>, transform_indices = @transform_8, window_bounds = array<i64: 16, 1>}, {pipeline_mode = #tpu.pipeline_mode<synchronous>, transform_indices = @transform_9, window_bounds = array<i64: 1, 256>}, {pipeline_mode = #tpu.pipeline_mode<synchronous>, transform_indices = @transform_10, window_bounds = array<i64: 3, 64>}, {pipeline_mode = #tpu.pipeline_mode<synchronous>, transform_indices = @transform_11, window_bounds = array<i64: 3, 1>}, {pipeline_mode = #tpu.pipeline_mode<synchronous>, transform_indices = @transform_12, window_bounds = array<i64: 1, 256>}, {transform_indices = @transform_13, window_bounds = array<i64: 3, 256>}]} {
    %c0 = arith.constant 0 : index
    %c0_0 = arith.constant 0 : index
    %0 = vector.load %arg1[%c0, %c0_0] : memref<8x256xf32, #tpu.memory_space<vmem>>, vector<8x256xf32>
    %c0_1 = arith.constant 0 : index
    %c0_2 = arith.constant 0 : index
    %1 = vector.load %arg2[%c0_1, %c0_2] : memref<16x72xf32, #tpu.memory_space<vmem>>, vector<16x72xf32>
    %c17_i32 = arith.constant 17 : i32
    %2 = tpu.dynamic_rotate %0 by %c17_i32 dim 1 : vector<8x256xf32>, i32 -> vector<8x256xf32>
    %c0_3 = arith.constant 0 : index
    %c0_4 = arith.constant 0 : index
    %c0_5 = arith.constant 0 : index
    %3 = vector.load %arg4[%c0_3, %c0_4, %c0_5] : memref<9x1x256xf32, #tpu.memory_space<vmem>>, vector<1x1x256xf32>
    %4 = vector.shape_cast %3 : vector<1x1x256xf32> to vector<1x256xf32>
    %5 = vector.broadcast %4 : vector<1x256xf32> to vector<8x256xf32>
    %6 = arith.mulf %2, %5 : vector<8x256xf32>
    %c16_i32 = arith.constant 16 : i32
    %7 = tpu.dynamic_rotate %0 by %c16_i32 dim 1 : vector<8x256xf32>, i32 -> vector<8x256xf32>
    %c1 = arith.constant 1 : index
    %c0_6 = arith.constant 0 : index
    %c0_7 = arith.constant 0 : index
    %8 = vector.load %arg4[%c1, %c0_6, %c0_7] : memref<9x1x256xf32, #tpu.memory_space<vmem>>, vector<1x1x256xf32>
    %9 = vector.shape_cast %8 : vector<1x1x256xf32> to vector<1x256xf32>
    %10 = vector.broadcast %9 : vector<1x256xf32> to vector<8x256xf32>
    %11 = arith.mulf %7, %10 : vector<8x256xf32>
    %c15_i32 = arith.constant 15 : i32
    %12 = tpu.dynamic_rotate %0 by %c15_i32 dim 1 : vector<8x256xf32>, i32 -> vector<8x256xf32>
    %c2 = arith.constant 2 : index
    %c0_8 = arith.constant 0 : index
    %c0_9 = arith.constant 0 : index
    %13 = vector.load %arg4[%c2, %c0_8, %c0_9] : memref<9x1x256xf32, #tpu.memory_space<vmem>>, vector<1x1x256xf32>
    %14 = vector.shape_cast %13 : vector<1x1x256xf32> to vector<1x256xf32>
    %15 = vector.broadcast %14 : vector<1x256xf32> to vector<8x256xf32>
    %16 = arith.mulf %12, %15 : vector<8x256xf32>
    %c1_i32 = arith.constant 1 : i32
    %17 = tpu.dynamic_rotate %0 by %c1_i32 dim 1 : vector<8x256xf32>, i32 -> vector<8x256xf32>
    %c3 = arith.constant 3 : index
    %c0_10 = arith.constant 0 : index
    %c0_11 = arith.constant 0 : index
    %18 = vector.load %arg4[%c3, %c0_10, %c0_11] : memref<9x1x256xf32, #tpu.memory_space<vmem>>, vector<1x1x256xf32>
    %19 = vector.shape_cast %18 : vector<1x1x256xf32> to vector<1x256xf32>
    %20 = vector.broadcast %19 : vector<1x256xf32> to vector<8x256xf32>
    %21 = arith.mulf %17, %20 : vector<8x256xf32>
    %c255_i32 = arith.constant 255 : i32
    %22 = tpu.dynamic_rotate %0 by %c255_i32 dim 1 : vector<8x256xf32>, i32 -> vector<8x256xf32>
    %c5 = arith.constant 5 : index
    %c0_12 = arith.constant 0 : index
    %c0_13 = arith.constant 0 : index
    %23 = vector.load %arg4[%c5, %c0_12, %c0_13] : memref<9x1x256xf32, #tpu.memory_space<vmem>>, vector<1x1x256xf32>
    %24 = vector.shape_cast %23 : vector<1x1x256xf32> to vector<1x256xf32>
    %25 = vector.broadcast %24 : vector<1x256xf32> to vector<8x256xf32>
    %26 = arith.mulf %22, %25 : vector<8x256xf32>
    %c241_i32 = arith.constant 241 : i32
    %27 = tpu.dynamic_rotate %0 by %c241_i32 dim 1 : vector<8x256xf32>, i32 -> vector<8x256xf32>
    %c6 = arith.constant 6 : index
    %c0_14 = arith.constant 0 : index
    %c0_15 = arith.constant 0 : index
    %28 = vector.load %arg4[%c6, %c0_14, %c0_15] : memref<9x1x256xf32, #tpu.memory_space<vmem>>, vector<1x1x256xf32>
    %29 = vector.shape_cast %28 : vector<1x1x256xf32> to vector<1x256xf32>
    %30 = vector.broadcast %29 : vector<1x256xf32> to vector<8x256xf32>
    %31 = arith.mulf %27, %30 : vector<8x256xf32>
    %c240_i32 = arith.constant 240 : i32
    %32 = tpu.dynamic_rotate %0 by %c240_i32 dim 1 : vector<8x256xf32>, i32 -> vector<8x256xf32>
    %c7 = arith.constant 7 : index
    %c0_16 = arith.constant 0 : index
    %c0_17 = arith.constant 0 : index
    %33 = vector.load %arg4[%c7, %c0_16, %c0_17] : memref<9x1x256xf32, #tpu.memory_space<vmem>>, vector<1x1x256xf32>
    %34 = vector.shape_cast %33 : vector<1x1x256xf32> to vector<1x256xf32>
    %35 = vector.broadcast %34 : vector<1x256xf32> to vector<8x256xf32>
    %36 = arith.mulf %32, %35 : vector<8x256xf32>
    %c239_i32 = arith.constant 239 : i32
    %37 = tpu.dynamic_rotate %0 by %c239_i32 dim 1 : vector<8x256xf32>, i32 -> vector<8x256xf32>
    %c8 = arith.constant 8 : index
    %c0_18 = arith.constant 0 : index
    %c0_19 = arith.constant 0 : index
    %38 = vector.load %arg4[%c8, %c0_18, %c0_19] : memref<9x1x256xf32, #tpu.memory_space<vmem>>, vector<1x1x256xf32>
    %39 = vector.shape_cast %38 : vector<1x1x256xf32> to vector<1x256xf32>
    %40 = vector.broadcast %39 : vector<1x256xf32> to vector<8x256xf32>
    %41 = arith.mulf %37, %40 : vector<8x256xf32>
    %42 = tpu.concatenate %6, %11, %16, %21, %0, %26, %31, %36, %41 in 0 : vector<8x256xf32>, vector<8x256xf32>, vector<8x256xf32>, vector<8x256xf32>, vector<8x256xf32>, vector<8x256xf32>, vector<8x256xf32>, vector<8x256xf32>, vector<8x256xf32> -> vector<72x256xf32>
    %cst = arith.constant dense<0.000000e+00> : vector<16x256xf32>
    %43 = tpu.matmul %1, %42, %cst {dimension_numbers = #tpu.dot_dimension_numbers<[1], [0], [0], [1], [0, 0, 1, 1], [], []>} : vector<16x72xf32>, vector<72x256xf32>, vector<16x256xf32> -> vector<16x256xf32>
    %c0_20 = arith.constant 0 : index
    %c0_21 = arith.constant 0 : index
    %44 = vector.load %arg3[%c0_20, %c0_21] : memref<16x1xf32, #tpu.memory_space<vmem>>, vector<16x1xf32>
    %45 = vector.broadcast %44 : vector<16x1xf32> to vector<16x256xf32>
    %46 = arith.addf %43, %45 : vector<16x256xf32>
    %cst_22 = arith.constant 0.000000e+00 : f32
    %47 = vector.broadcast %cst_22 : f32 to vector<16x256xf32>
    %48 = arith.maximumf %46, %47 : vector<16x256xf32>
    %c255_i32_23 = arith.constant 255 : i32
    %49 = tpu.dynamic_rotate %48 by %c255_i32_23 dim 1 : vector<16x256xf32>, i32 -> vector<16x256xf32>
    %50 = arith.maximumf %48, %49 : vector<16x256xf32>
    %c240_i32_24 = arith.constant 240 : i32
    %51 = tpu.dynamic_rotate %50 by %c240_i32_24 dim 1 : vector<16x256xf32>, i32 -> vector<16x256xf32>
    %52 = arith.maximumf %50, %51 : vector<16x256xf32>
    %c0_25 = arith.constant 0 : index
    %c0_26 = arith.constant 0 : index
    %53 = vector.load %arg5[%c0_25, %c0_26] : memref<8x144xf32, #tpu.memory_space<vmem>>, vector<8x144xf32>
    %c34_i32 = arith.constant 34 : i32
    %54 = tpu.dynamic_rotate %52 by %c34_i32 dim 1 : vector<16x256xf32>, i32 -> vector<16x256xf32>
    %c0_27 = arith.constant 0 : index
    %c0_28 = arith.constant 0 : index
    %c0_29 = arith.constant 0 : index
    %55 = vector.load %arg7[%c0_27, %c0_28, %c0_29] : memref<9x1x256xf32, #tpu.memory_space<vmem>>, vector<1x1x256xf32>
    %56 = vector.shape_cast %55 : vector<1x1x256xf32> to vector<1x256xf32>
    %57 = vector.broadcast %56 : vector<1x256xf32> to vector<16x256xf32>
    %58 = arith.mulf %54, %57 : vector<16x256xf32>
    %c32_i32 = arith.constant 32 : i32
    %59 = tpu.dynamic_rotate %52 by %c32_i32 dim 1 : vector<16x256xf32>, i32 -> vector<16x256xf32>
    %c1_30 = arith.constant 1 : index
    %c0_31 = arith.constant 0 : index
    %c0_32 = arith.constant 0 : index
    %60 = vector.load %arg7[%c1_30, %c0_31, %c0_32] : memref<9x1x256xf32, #tpu.memory_space<vmem>>, vector<1x1x256xf32>
    %61 = vector.shape_cast %60 : vector<1x1x256xf32> to vector<1x256xf32>
    %62 = vector.broadcast %61 : vector<1x256xf32> to vector<16x256xf32>
    %63 = arith.mulf %59, %62 : vector<16x256xf32>
    %c30_i32 = arith.constant 30 : i32
    %64 = tpu.dynamic_rotate %52 by %c30_i32 dim 1 : vector<16x256xf32>, i32 -> vector<16x256xf32>
    %c2_33 = arith.constant 2 : index
    %c0_34 = arith.constant 0 : index
    %c0_35 = arith.constant 0 : index
    %65 = vector.load %arg7[%c2_33, %c0_34, %c0_35] : memref<9x1x256xf32, #tpu.memory_space<vmem>>, vector<1x1x256xf32>
    %66 = vector.shape_cast %65 : vector<1x1x256xf32> to vector<1x256xf32>
    %67 = vector.broadcast %66 : vector<1x256xf32> to vector<16x256xf32>
    %68 = arith.mulf %64, %67 : vector<16x256xf32>
    %c2_i32 = arith.constant 2 : i32
    %69 = tpu.dynamic_rotate %52 by %c2_i32 dim 1 : vector<16x256xf32>, i32 -> vector<16x256xf32>
    %c3_36 = arith.constant 3 : index
    %c0_37 = arith.constant 0 : index
    %c0_38 = arith.constant 0 : index
    %70 = vector.load %arg7[%c3_36, %c0_37, %c0_38] : memref<9x1x256xf32, #tpu.memory_space<vmem>>, vector<1x1x256xf32>
    %71 = vector.shape_cast %70 : vector<1x1x256xf32> to vector<1x256xf32>
    %72 = vector.broadcast %71 : vector<1x256xf32> to vector<16x256xf32>
    %73 = arith.mulf %69, %72 : vector<16x256xf32>
    %c254_i32 = arith.constant 254 : i32
    %74 = tpu.dynamic_rotate %52 by %c254_i32 dim 1 : vector<16x256xf32>, i32 -> vector<16x256xf32>
    %c5_39 = arith.constant 5 : index
    %c0_40 = arith.constant 0 : index
    %c0_41 = arith.constant 0 : index
    %75 = vector.load %arg7[%c5_39, %c0_40, %c0_41] : memref<9x1x256xf32, #tpu.memory_space<vmem>>, vector<1x1x256xf32>
    %76 = vector.shape_cast %75 : vector<1x1x256xf32> to vector<1x256xf32>
    %77 = vector.broadcast %76 : vector<1x256xf32> to vector<16x256xf32>
    %78 = arith.mulf %74, %77 : vector<16x256xf32>
    %c226_i32 = arith.constant 226 : i32
    %79 = tpu.dynamic_rotate %52 by %c226_i32 dim 1 : vector<16x256xf32>, i32 -> vector<16x256xf32>
    %c6_42 = arith.constant 6 : index
    %c0_43 = arith.constant 0 : index
    %c0_44 = arith.constant 0 : index
    %80 = vector.load %arg7[%c6_42, %c0_43, %c0_44] : memref<9x1x256xf32, #tpu.memory_space<vmem>>, vector<1x1x256xf32>
    %81 = vector.shape_cast %80 : vector<1x1x256xf32> to vector<1x256xf32>
    %82 = vector.broadcast %81 : vector<1x256xf32> to vector<16x256xf32>
    %83 = arith.mulf %79, %82 : vector<16x256xf32>
    %c224_i32 = arith.constant 224 : i32
    %84 = tpu.dynamic_rotate %52 by %c224_i32 dim 1 : vector<16x256xf32>, i32 -> vector<16x256xf32>
    %c7_45 = arith.constant 7 : index
    %c0_46 = arith.constant 0 : index
    %c0_47 = arith.constant 0 : index
    %85 = vector.load %arg7[%c7_45, %c0_46, %c0_47] : memref<9x1x256xf32, #tpu.memory_space<vmem>>, vector<1x1x256xf32>
    %86 = vector.shape_cast %85 : vector<1x1x256xf32> to vector<1x256xf32>
    %87 = vector.broadcast %86 : vector<1x256xf32> to vector<16x256xf32>
    %88 = arith.mulf %84, %87 : vector<16x256xf32>
    %c222_i32 = arith.constant 222 : i32
    %89 = tpu.dynamic_rotate %52 by %c222_i32 dim 1 : vector<16x256xf32>, i32 -> vector<16x256xf32>
    %c8_48 = arith.constant 8 : index
    %c0_49 = arith.constant 0 : index
    %c0_50 = arith.constant 0 : index
    %90 = vector.load %arg7[%c8_48, %c0_49, %c0_50] : memref<9x1x256xf32, #tpu.memory_space<vmem>>, vector<1x1x256xf32>
    %91 = vector.shape_cast %90 : vector<1x1x256xf32> to vector<1x256xf32>
    %92 = vector.broadcast %91 : vector<1x256xf32> to vector<16x256xf32>
    %93 = arith.mulf %89, %92 : vector<16x256xf32>
    %94 = tpu.concatenate %58, %63, %68, %73, %52, %78, %83, %88, %93 in 0 : vector<16x256xf32>, vector<16x256xf32>, vector<16x256xf32>, vector<16x256xf32>, vector<16x256xf32>, vector<16x256xf32>, vector<16x256xf32>, vector<16x256xf32>, vector<16x256xf32> -> vector<144x256xf32>
    %cst_51 = arith.constant dense<0.000000e+00> : vector<8x256xf32>
    %95 = tpu.matmul %53, %94, %cst_51 {dimension_numbers = #tpu.dot_dimension_numbers<[1], [0], [0], [1], [0, 0, 1, 1], [], []>} : vector<8x144xf32>, vector<144x256xf32>, vector<8x256xf32> -> vector<8x256xf32>
    %c0_52 = arith.constant 0 : index
    %c0_53 = arith.constant 0 : index
    %96 = vector.load %arg6[%c0_52, %c0_53] : memref<8x1xf32, #tpu.memory_space<vmem>>, vector<8x1xf32>
    %97 = vector.broadcast %96 : vector<8x1xf32> to vector<8x256xf32>
    %98 = arith.addf %95, %97 : vector<8x256xf32>
    %cst_54 = arith.constant 0.000000e+00 : f32
    %99 = vector.broadcast %cst_54 : f32 to vector<8x256xf32>
    %100 = arith.maximumf %98, %99 : vector<8x256xf32>
    %c254_i32_55 = arith.constant 254 : i32
    %101 = tpu.dynamic_rotate %100 by %c254_i32_55 dim 1 : vector<8x256xf32>, i32 -> vector<8x256xf32>
    %102 = arith.maximumf %100, %101 : vector<8x256xf32>
    %c224_i32_56 = arith.constant 224 : i32
    %103 = tpu.dynamic_rotate %102 by %c224_i32_56 dim 1 : vector<8x256xf32>, i32 -> vector<8x256xf32>
    %104 = arith.maximumf %102, %103 : vector<8x256xf32>
    %c0_57 = arith.constant 0 : index
    %c0_58 = arith.constant 0 : index
    %105 = vector.load %arg10[%c0_57, %c0_58] : memref<1x256xf32, #tpu.memory_space<vmem>>, vector<1x256xf32>
    %106 = vector.broadcast %105 : vector<1x256xf32> to vector<8x256xf32>
    %107 = arith.mulf %104, %106 : vector<8x256xf32>
    %c0_59 = arith.constant 0 : index
    %c0_60 = arith.constant 0 : index
    %108 = vector.load %arg8[%c0_59, %c0_60] : memref<16x32xf32, #tpu.memory_space<vmem>>, vector<16x32xf32>
    %c2_i32_61 = arith.constant 2 : i32
    %109 = tpu.dynamic_rotate %107 by %c2_i32_61 dim 1 : vector<8x256xf32>, i32 -> vector<8x256xf32>
    %c32_i32_62 = arith.constant 32 : i32
    %110 = tpu.dynamic_rotate %107 by %c32_i32_62 dim 1 : vector<8x256xf32>, i32 -> vector<8x256xf32>
    %c34_i32_63 = arith.constant 34 : i32
    %111 = tpu.dynamic_rotate %107 by %c34_i32_63 dim 1 : vector<8x256xf32>, i32 -> vector<8x256xf32>
    %112 = tpu.concatenate %107, %109, %110, %111 in 0 : vector<8x256xf32>, vector<8x256xf32>, vector<8x256xf32>, vector<8x256xf32> -> vector<32x256xf32>
    %cst_64 = arith.constant dense<0.000000e+00> : vector<16x256xf32>
    %113 = tpu.matmul %108, %112, %cst_64 {dimension_numbers = #tpu.dot_dimension_numbers<[1], [0], [0], [1], [0, 0, 1, 1], [], []>} : vector<16x32xf32>, vector<32x256xf32>, vector<16x256xf32> -> vector<16x256xf32>
    %c0_65 = arith.constant 0 : index
    %c0_66 = arith.constant 0 : index
    %114 = vector.load %arg9[%c0_65, %c0_66] : memref<16x1xf32, #tpu.memory_space<vmem>>, vector<16x1xf32>
    %115 = vector.broadcast %114 : vector<16x1xf32> to vector<16x256xf32>
    %116 = arith.addf %113, %115 : vector<16x256xf32>
    %cst_67 = arith.constant 0.000000e+00 : f32
    %117 = vector.broadcast %cst_67 : f32 to vector<16x256xf32>
    %118 = arith.maximumf %116, %117 : vector<16x256xf32>
    %c0_68 = arith.constant 0 : index
    %c0_69 = arith.constant 0 : index
    %119 = vector.load %arg13[%c0_68, %c0_69] : memref<1x256xf32, #tpu.memory_space<vmem>>, vector<1x256xf32>
    %120 = vector.broadcast %119 : vector<1x256xf32> to vector<16x256xf32>
    %121 = arith.mulf %118, %120 : vector<16x256xf32>
    %c0_70 = arith.constant 0 : index
    %c0_71 = arith.constant 0 : index
    %122 = vector.load %arg11[%c0_70, %c0_71] : memref<3x64xf32, #tpu.memory_space<vmem>>, vector<3x64xf32>
    %c1_i32_72 = arith.constant 1 : i32
    %123 = tpu.dynamic_rotate %121 by %c1_i32_72 dim 1 : vector<16x256xf32>, i32 -> vector<16x256xf32>
    %c16_i32_73 = arith.constant 16 : i32
    %124 = tpu.dynamic_rotate %121 by %c16_i32_73 dim 1 : vector<16x256xf32>, i32 -> vector<16x256xf32>
    %c17_i32_74 = arith.constant 17 : i32
    %125 = tpu.dynamic_rotate %121 by %c17_i32_74 dim 1 : vector<16x256xf32>, i32 -> vector<16x256xf32>
    %126 = tpu.concatenate %121, %123, %124, %125 in 0 : vector<16x256xf32>, vector<16x256xf32>, vector<16x256xf32>, vector<16x256xf32> -> vector<64x256xf32>
    %cst_75 = arith.constant dense<0.000000e+00> : vector<3x256xf32>
    %127 = tpu.matmul %122, %126, %cst_75 {dimension_numbers = #tpu.dot_dimension_numbers<[1], [0], [0], [1], [0, 0, 1, 1], [], []>} : vector<3x64xf32>, vector<64x256xf32>, vector<3x256xf32> -> vector<3x256xf32>
    %c0_76 = arith.constant 0 : index
    %c0_77 = arith.constant 0 : index
    %128 = vector.load %arg12[%c0_76, %c0_77] : memref<3x1xf32, #tpu.memory_space<vmem>>, vector<3x1xf32>
    %129 = vector.broadcast %128 : vector<3x1xf32> to vector<3x256xf32>
    %130 = arith.addf %127, %129 : vector<3x256xf32>
    %cst_78 = arith.constant 0.000000e+00 : f32
    %131 = vector.broadcast %cst_78 : f32 to vector<3x256xf32>
    %132 = arith.subf %131, %130 : vector<3x256xf32>
    %133 = math.exp %132 : vector<3x256xf32>
    %cst_79 = arith.constant 1.000000e+00 : f32
    %134 = vector.broadcast %cst_79 : f32 to vector<3x256xf32>
    %135 = arith.addf %134, %133 : vector<3x256xf32>
    %136 = tpu.reciprocal %135 : vector<3x256xf32> -> vector<3x256xf32>
    %c0_80 = arith.constant 0 : index
    %c0_81 = arith.constant 0 : index
    %137 = vector.load %arg14[%c0_80, %c0_81] : memref<3x256xf32, #tpu.memory_space<vmem>>, vector<3x256xf32>
    tpu.vector_store %arg14[%c0_80, %c0_81], %136 {strides = array<i32>} : memref<3x256xf32, #tpu.memory_space<vmem>>, vector<3x256xf32>,
    return
  }
  func.func @transform_0(%arg0: i32) -> (i32, i32) {
    %c0_i32 = arith.constant 0 : i32
    %c0_i32_0 = arith.constant 0 : i32
    return %c0_i32, %arg0 : i32, i32
  }
  func.func @transform_1(%arg0: i32) -> (i32, i32) {
    %c0_i32 = arith.constant 0 : i32
    %c0_i32_0 = arith.constant 0 : i32
    %c0_i32_1 = arith.constant 0 : i32
    return %c0_i32, %c0_i32_0 : i32, i32
  }
  func.func @transform_2(%arg0: i32) -> (i32, i32) {
    %c0_i32 = arith.constant 0 : i32
    %c0_i32_0 = arith.constant 0 : i32
    %c0_i32_1 = arith.constant 0 : i32
    return %c0_i32, %c0_i32_0 : i32, i32
  }
  func.func @transform_3(%arg0: i32) -> (i32, i32, i32) {
    %c0_i32 = arith.constant 0 : i32
    %c0_i32_0 = arith.constant 0 : i32
    %c0_i32_1 = arith.constant 0 : i32
    %c0_i32_2 = arith.constant 0 : i32
    return %c0_i32, %c0_i32_0, %c0_i32_1 : i32, i32, i32
  }
  func.func @transform_4(%arg0: i32) -> (i32, i32) {
    %c0_i32 = arith.constant 0 : i32
    %c0_i32_0 = arith.constant 0 : i32
    %c0_i32_1 = arith.constant 0 : i32
    return %c0_i32, %c0_i32_0 : i32, i32
  }
  func.func @transform_5(%arg0: i32) -> (i32, i32) {
    %c0_i32 = arith.constant 0 : i32
    %c0_i32_0 = arith.constant 0 : i32
    %c0_i32_1 = arith.constant 0 : i32
    return %c0_i32, %c0_i32_0 : i32, i32
  }
  func.func @transform_6(%arg0: i32) -> (i32, i32, i32) {
    %c0_i32 = arith.constant 0 : i32
    %c0_i32_0 = arith.constant 0 : i32
    %c0_i32_1 = arith.constant 0 : i32
    %c0_i32_2 = arith.constant 0 : i32
    return %c0_i32, %c0_i32_0, %c0_i32_1 : i32, i32, i32
  }
  func.func @transform_7(%arg0: i32) -> (i32, i32) {
    %c0_i32 = arith.constant 0 : i32
    %c0_i32_0 = arith.constant 0 : i32
    %c0_i32_1 = arith.constant 0 : i32
    return %c0_i32, %c0_i32_0 : i32, i32
  }
  func.func @transform_8(%arg0: i32) -> (i32, i32) {
    %c0_i32 = arith.constant 0 : i32
    %c0_i32_0 = arith.constant 0 : i32
    %c0_i32_1 = arith.constant 0 : i32
    return %c0_i32, %c0_i32_0 : i32, i32
  }
  func.func @transform_9(%arg0: i32) -> (i32, i32) {
    %c0_i32 = arith.constant 0 : i32
    %c0_i32_0 = arith.constant 0 : i32
    %c0_i32_1 = arith.constant 0 : i32
    return %c0_i32, %c0_i32_0 : i32, i32
  }
  func.func @transform_10(%arg0: i32) -> (i32, i32) {
    %c0_i32 = arith.constant 0 : i32
    %c0_i32_0 = arith.constant 0 : i32
    %c0_i32_1 = arith.constant 0 : i32
    return %c0_i32, %c0_i32_0 : i32, i32
  }
  func.func @transform_11(%arg0: i32) -> (i32, i32) {
    %c0_i32 = arith.constant 0 : i32
    %c0_i32_0 = arith.constant 0 : i32
    %c0_i32_1 = arith.constant 0 : i32
    return %c0_i32, %c0_i32_0 : i32, i32
  }
  func.func @transform_12(%arg0: i32) -> (i32, i32) {
    %c0_i32 = arith.constant 0 : i32
    %c0_i32_0 = arith.constant 0 : i32
    %c0_i32_1 = arith.constant 0 : i32
    return %c0_i32, %c0_i32_0 : i32, i32
  }
  func.func @transform_13(%arg0: i32) -> (i32, i32) {
    %c0_i32 = arith.constant 0 : i32
    %c0_i32_0 = arith.constant 0 : i32
    return %c0_i32, %arg0 : i32, i32
  }
}

</mosaic_0001>

<llo_original>
// kernel: conv_autoencoder_forward.1
$region0: #{conv_autoencoder_forward.1}
  #allocation0 [shape = 'u32[]', space=smem, size = 0x4, offset = 0x4, fixed_abs, tag = 'smem constant byte address 0x4 - core index']
  #allocation1 [shape = 'u32[144,128]{1,0:T(1,128)}', space=vmem, size = 0x12000, scoped, tag = 'internal scratch']
  %s0 = inlined_call_operand.vmem [shape: f32[8,512], index: 0, kind: input, shape index: {}]
  %s1 = inlined_call_operand.vmem [shape: f32[16,72], index: 1, kind: input, shape index: {}]
  %s2 = inlined_call_operand.vmem [shape: f32[16,1], index: 2, kind: input, shape index: {}]
  %s3 = inlined_call_operand.vmem [shape: f32[9,1,256], index: 3, kind: input, shape index: {}]
  %s4 = inlined_call_operand.vmem [shape: f32[8,144], index: 4, kind: input, shape index: {}]
  %s5 = inlined_call_operand.vmem [shape: f32[8,1], index: 5, kind: input, shape index: {}]
  %s6 = inlined_call_operand.vmem [shape: f32[9,1,256], index: 6, kind: input, shape index: {}]
  %s7 = inlined_call_operand.vmem [shape: f32[16,32], index: 7, kind: input, shape index: {}]
  %s8 = inlined_call_operand.vmem [shape: f32[16,1], index: 8, kind: input, shape index: {}]
  %s9 = inlined_call_operand.vmem [shape: f32[1,256], index: 9, kind: input, shape index: {}]
  %s10 = inlined_call_operand.vmem [shape: f32[3,64], index: 10, kind: input, shape index: {}]
  %s11 = inlined_call_operand.vmem [shape: f32[3,1], index: 11, kind: input, shape index: {}]
  %s12 = inlined_call_operand.vmem [shape: f32[1,256], index: 12, kind: input, shape index: {}]
  %s13 = inlined_call_operand.vmem [shape: f32[3,512], index: 13, kind: output, shape index: {}]
  %s14 = sld [smem:[#allocation0]]
  $region85: #{conv_autoencoder_forward.1} parent=0
    _
  %s16 = ssub.s32 1, %s14
  %s17 = scalar_select 0, %s16, %s14
  loop: start=0, step=1, limit=4
  $region2: #{conv_autoencoder_forward.1} parent=0 // loop_pre_header
    _
  $region3: #{conv_autoencoder_forward.1} parent=0 // loop_header
    %s19 = sphi 0, %s23
    %p20 = scmp.ge.s32.totalorder %s19, 4
    %s29 = sphi 0, %s31
    %s32 = sphi 0, %s29
    %s33 = sphi 0, %s32
    %s49 = sphi 0, %s33
    %s53 = sphi 0, %s53
    %s55 = sphi 0, %s53
    %s56 = sphi 0, %s55
    %s70 = sphi 0, %s56
    %s74 = sphi 0, %s74
    %s76 = sphi 0, %s74
    %s77 = sphi 0, %s76
    %s91 = sphi 0, %s77
    %s95 = sphi 0, %s95
    %s97 = sphi 0, %s95
    %s98 = sphi 0, %s97
    %s112 = sphi 0, %s98
    %s116 = sphi 0, %s116
    %s118 = sphi 0, %s116
    %s119 = sphi 0, %s118
    %s133 = sphi 0, %s119
    %s137 = sphi 0, %s137
    %s139 = sphi 0, %s137
    %s140 = sphi 0, %s139
    %s154 = sphi 0, %s140
    %s158 = sphi 0, %s158
    %s160 = sphi 0, %s158
    %s161 = sphi 0, %s160
    %s175 = sphi 0, %s161
    %s179 = sphi 0, %s179
    %s181 = sphi 0, %s179
    %s182 = sphi 0, %s181
    %s196 = sphi 0, %s182
    %s200 = sphi 0, %s200
    %s202 = sphi 0, %s200
    %s203 = sphi 0, %s202
    %s217 = sphi 0, %s203
    %s221 = sphi 0, %s221
    %s223 = sphi 0, %s221
    %s224 = sphi 0, %s223
    %s238 = sphi 0, %s224
    %s242 = sphi 0, %s242
    %s244 = sphi 0, %s242
    %s245 = sphi 0, %s244
    %s259 = sphi 0, %s245
    %s263 = sphi 0, %s263
    %s265 = sphi 0, %s263
    %s266 = sphi 0, %s265
    %s280 = sphi 0, %s266
    %s284 = sphi 0, %s284
    %s286 = sphi 0, %s284
    %s287 = sphi 0, %s286
    %s301 = sphi 0, %s287
    %s307 = sphi 0, %s309
    %s310 = sphi 0, %s307
    %s311 = sphi 0, %s310
    %s327 = sphi 0, %s311
  $region4: #{conv_autoencoder_forward.1} parent=0 // loop_header_branch
    %22 = sbr.rel (%p20) target = $region8
  $region5: #{conv_autoencoder_forward.1} parent=0 // loop_body
    %s24 = ssub.s32 %s19, 1
    %s25 = ssub.s32 %s19, 2
    %s26 = sadd.s32 %s19, 1
    %s27 = ssub.s32 %s19, %s26
    %p28 = scmp.eq.s32.totalorder %s27, 0
    %s30 = sadd.s32 %s29, 1
    %s31 = scalar_select %p28, %s29, %s30
    %p34 = pneg %p28
    %p35 = scmp.eq.s32.totalorder %s19, 1
    %p36 = por %p34, %p35
    %p37 = scmp.ne.s32.totalorder %s29, %s32
    %p38 = scmp.eq.s32.totalorder %s19, 0
    %p39 = por %p37, %p38
    %p40 = scmp.ne.s32.totalorder %s29, %s32
    %p41 = scmp.eq.s32.totalorder %s24, 1
    %p42 = por %p40, %p41
    %p43 = scmp.ne.s32.totalorder %s32, %s33
    %p44 = scmp.eq.s32.totalorder %s24, 0
    %p45 = por %p43, %p44
    %p46 = scmp.ne.s32.totalorder %s32, %s33
    %p47 = scmp.eq.s32.totalorder %s25, 1
    %p48 = por %p46, %p47
    %p50 = scmp.ne.s32.totalorder %s33, %s49
    %p51 = scmp.eq.s32.totalorder %s25, 0
    %p52 = por %p50, %p51
    %s54 = sadd.s32 %s53, 1
    %p57 = scmp.eq.s32.totalorder %s19, 1
    %p58 = scmp.ne.s32.totalorder %s53, %s55
    %p59 = scmp.eq.s32.totalorder %s19, 0
    %p60 = por %p58, %p59
    %p61 = scmp.ne.s32.totalorder %s53, %s55
    %p62 = scmp.eq.s32.totalorder %s24, 1
    %p63 = por %p61, %p62
    %p64 = scmp.ne.s32.totalorder %s55, %s56
    %p65 = scmp.eq.s32.totalorder %s24, 0
    %p66 = por %p64, %p65
    %p67 = scmp.ne.s32.totalorder %s55, %s56
    %p68 = scmp.eq.s32.totalorder %s25, 1
    %p69 = por %p67, %p68
    %p71 = scmp.ne.s32.totalorder %s56, %s70
    %p72 = scmp.eq.s32.totalorder %s25, 0
    %p73 = por %p71, %p72
    %s75 = sadd.s32 %s74, 1
    %p78 = scmp.eq.s32.totalorder %s19, 1
    %p79 = scmp.ne.s32.totalorder %s74, %s76
    %p80 = scmp.eq.s32.totalorder %s19, 0
    %p81 = por %p79, %p80
    %p82 = scmp.ne.s32.totalorder %s74, %s76
    %p83 = scmp.eq.s32.totalorder %s24, 1
    %p84 = por %p82, %p83
    %p85 = scmp.ne.s32.totalorder %s76, %s77
    %p86 = scmp.eq.s32.totalorder %s24, 0
    %p87 = por %p85, %p86
    %p88 = scmp.ne.s32.totalorder %s76, %s77
    %p89 = scmp.eq.s32.totalorder %s25, 1
    %p90 = por %p88, %p89
    %p92 = scmp.ne.s32.totalorder %s77, %s91
    %p93 = scmp.eq.s32.totalorder %s25, 0
    %p94 = por %p92, %p93
    %s96 = sadd.s32 %s95, 1
    %p99 = scmp.eq.s32.totalorder %s19, 1
    %p100 = scmp.ne.s32.totalorder %s95, %s97
    %p101 = scmp.eq.s32.totalorder %s19, 0
    %p102 = por %p100, %p101
    %p103 = scmp.ne.s32.totalorder %s95, %s97
    %p104 = scmp.eq.s32.totalorder %s24, 1
    %p105 = por %p103, %p104
    %p106 = scmp.ne.s32.totalorder %s97, %s98
    %p107 = scmp.eq.s32.totalorder %s24, 0
    %p108 = por %p106, %p107
    %p109 = scmp.ne.s32.totalorder %s97, %s98
    %p110 = scmp.eq.s32.totalorder %s25, 1
    %p111 = por %p109, %p110
    %p113 = scmp.ne.s32.totalorder %s98, %s112
    %p114 = scmp.eq.s32.totalorder %s25, 0
    %p115 = por %p113, %p114
    %s117 = sadd.s32 %s116, 1
    %p120 = scmp.eq.s32.totalorder %s19, 1
    %p121 = scmp.ne.s32.totalorder %s116, %s118
    %p122 = scmp.eq.s32.totalorder %s19, 0
    %p123 = por %p121, %p122
    %p124 = scmp.ne.s32.totalorder %s116, %s118
    %p125 = scmp.eq.s32.totalorder %s24, 1
    %p126 = por %p124, %p125
    %p127 = scmp.ne.s32.totalorder %s118, %s119
    %p128 = scmp.eq.s32.totalorder %s24, 0
    %p129 = por %p127, %p128
    %p130 = scmp.ne.s32.totalorder %s118, %s119
    %p131 = scmp.eq.s32.totalorder %s25, 1
    %p132 = por %p130, %p131
    %p134 = scmp.ne.s32.totalorder %s119, %s133
    %p135 = scmp.eq.s32.totalorder %s25, 0
    %p136 = por %p134, %p135
    %s138 = sadd.s32 %s137, 1
    %p141 = scmp.eq.s32.totalorder %s19, 1
    %p142 = scmp.ne.s32.totalorder %s137, %s139
    %p143 = scmp.eq.s32.totalorder %s19, 0
    %p144 = por %p142, %p143
    %p145 = scmp.ne.s32.totalorder %s137, %s139
    %p146 = scmp.eq.s32.totalorder %s24, 1
    %p147 = por %p145, %p146
    %p148 = scmp.ne.s32.totalorder %s139, %s140
    %p149 = scmp.eq.s32.totalorder %s24, 0
    %p150 = por %p148, %p149
    %p151 = scmp.ne.s32.totalorder %s139, %s140
    %p152 = scmp.eq.s32.totalorder %s25, 1
    %p153 = por %p151, %p152
    %p155 = scmp.ne.s32.totalorder %s140, %s154
    %p156 = scmp.eq.s32.totalorder %s25, 0
    %p157 = por %p155, %p156
    %s159 = sadd.s32 %s158, 1
    %p162 = scmp.eq.s32.totalorder %s19, 1
    %p163 = scmp.ne.s32.totalorder %s158, %s160
    %p164 = scmp.eq.s32.totalorder %s19, 0
    %p165 = por %p163, %p164
    %p166 = scmp.ne.s32.totalorder %s158, %s160
    %p167 = scmp.eq.s32.totalorder %s24, 1
    %p168 = por %p166, %p167
    %p169 = scmp.ne.s32.totalorder %s160, %s161
    %p170 = scmp.eq.s32.totalorder %s24, 0
    %p171 = por %p169, %p170
    %p172 = scmp.ne.s32.totalorder %s160, %s161
    %p173 = scmp.eq.s32.totalorder %s25, 1
    %p174 = por %p172, %p173
    %p176 = scmp.ne.s32.totalorder %s161, %s175
    %p177 = scmp.eq.s32.totalorder %s25, 0
    %p178 = por %p176, %p177
    %s180 = sadd.s32 %s179, 1
    %p183 = scmp.eq.s32.totalorder %s19, 1
    %p184 = scmp.ne.s32.totalorder %s179, %s181
    %p185 = scmp.eq.s32.totalorder %s19, 0
    %p186 = por %p184, %p185
    %p187 = scmp.ne.s32.totalorder %s179, %s181
    %p188 = scmp.eq.s32.totalorder %s24, 1
    %p189 = por %p187, %p188
    %p190 = scmp.ne.s32.totalorder %s181, %s182
    %p191 = scmp.eq.s32.totalorder %s24, 0
    %p192 = por %p190, %p191
    %p193 = scmp.ne.s32.totalorder %s181, %s182
    %p194 = scmp.eq.s32.totalorder %s25, 1
    %p195 = por %p193, %p194
    %p197 = scmp.ne.s32.totalorder %s182, %s196
    %p198 = scmp.eq.s32.totalorder %s25, 0
    %p199 = por %p197, %p198
    %s201 = sadd.s32 %s200, 1
    %p204 = scmp.eq.s32.totalorder %s19, 1
    %p205 = scmp.ne.s32.totalorder %s200, %s202
    %p206 = scmp.eq.s32.totalorder %s19, 0
    %p207 = por %p205, %p206
    %p208 = scmp.ne.s32.totalorder %s200, %s202
    %p209 = scmp.eq.s32.totalorder %s24, 1
    %p210 = por %p208, %p209
    %p211 = scmp.ne.s32.totalorder %s202, %s203
    %p212 = scmp.eq.s32.totalorder %s24, 0
    %p213 = por %p211, %p212
    %p214 = scmp.ne.s32.totalorder %s202, %s203
    %p215 = scmp.eq.s32.totalorder %s25, 1
    %p216 = por %p214, %p215
    %p218 = scmp.ne.s32.totalorder %s203, %s217
    %p219 = scmp.eq.s32.totalorder %s25, 0
    %p220 = por %p218, %p219
    %s222 = sadd.s32 %s221, 1
    %p225 = scmp.eq.s32.totalorder %s19, 1
    %p226 = scmp.ne.s32.totalorder %s221, %s223
    %p227 = scmp.eq.s32.totalorder %s19, 0
    %p228 = por %p226, %p227
    %p229 = scmp.ne.s32.totalorder %s221, %s223
    %p230 = scmp.eq.s32.totalorder %s24, 1
    %p231 = por %p229, %p230
    %p232 = scmp.ne.s32.totalorder %s223, %s224
    %p233 = scmp.eq.s32.totalorder %s24, 0
    %p234 = por %p232, %p233
    %p235 = scmp.ne.s32.totalorder %s223, %s224
    %p236 = scmp.eq.s32.totalorder %s25, 1
    %p237 = por %p235, %p236
    %p239 = scmp.ne.s32.totalorder %s224, %s238
    %p240 = scmp.eq.s32.totalorder %s25, 0
    %p241 = por %p239, %p240
    %s243 = sadd.s32 %s242, 1
    %p246 = scmp.eq.s32.totalorder %s19, 1
    %p247 = scmp.ne.s32.totalorder %s242, %s244
    %p248 = scmp.eq.s32.totalorder %s19, 0
    %p249 = por %p247, %p248
    %p250 = scmp.ne.s32.totalorder %s242, %s244
    %p251 = scmp.eq.s32.totalorder %s24, 1
    %p252 = por %p250, %p251
    %p253 = scmp.ne.s32.totalorder %s244, %s245
    %p254 = scmp.eq.s32.totalorder %s24, 0
    %p255 = por %p253, %p254
    %p256 = scmp.ne.s32.totalorder %s244, %s245
    %p257 = scmp.eq.s32.totalorder %s25, 1
    %p258 = por %p256, %p257
    %p260 = scmp.ne.s32.totalorder %s245, %s259
    %p261 = scmp.eq.s32.totalorder %s25, 0
    %p262 = por %p260, %p261
    %s264 = sadd.s32 %s263, 1
    %p267 = scmp.eq.s32.totalorder %s19, 1
    %p268 = scmp.ne.s32.totalorder %s263, %s265
    %p269 = scmp.eq.s32.totalorder %s19, 0
    %p270 = por %p268, %p269
    %p271 = scmp.ne.s32.totalorder %s263, %s265
    %p272 = scmp.eq.s32.totalorder %s24, 1
    %p273 = por %p271, %p272
    %p274 = scmp.ne.s32.totalorder %s265, %s266
    %p275 = scmp.eq.s32.totalorder %s24, 0
    %p276 = por %p274, %p275
    %p277 = scmp.ne.s32.totalorder %s265, %s266
    %p278 = scmp.eq.s32.totalorder %s25, 1
    %p279 = por %p277, %p278
    %p281 = scmp.ne.s32.totalorder %s266, %s280
    %p282 = scmp.eq.s32.totalorder %s25, 0
    %p283 = por %p281, %p282
    %s285 = sadd.s32 %s284, 1
    %p288 = scmp.eq.s32.totalorder %s19, 1
    %p289 = scmp.ne.s32.totalorder %s284, %s286
    %p290 = scmp.eq.s32.totalorder %s19, 0
    %p291 = por %p289, %p290
    %p292 = scmp.ne.s32.totalorder %s284, %s286
    %p293 = scmp.eq.s32.totalorder %s24, 1
    %p294 = por %p292, %p293
    %p295 = scmp.ne.s32.totalorder %s286, %s287
    %p296 = scmp.eq.s32.totalorder %s24, 0
    %p297 = por %p295, %p296
    %p298 = scmp.ne.s32.totalorder %s286, %s287
    %p299 = scmp.eq.s32.totalorder %s25, 1
    %p300 = por %p298, %p299
    %p302 = scmp.ne.s32.totalorder %s287, %s301
    %p303 = scmp.eq.s32.totalorder %s25, 0
    %p304 = por %p302, %p303
    %s305 = ssub.s32 %s19, %s26
    %p306 = scmp.eq.s32.totalorder %s305, 0
    %s308 = sadd.s32 %s307, 1
    %s309 = scalar_select %p306, %s307, %s308
    %p312 = pneg %p306
    %p313 = scmp.eq.s32.totalorder %s19, 1
    %p314 = por %p312, %p313
    %p315 = scmp.ne.s32.totalorder %s307, %s310
    %p316 = scmp.eq.s32.totalorder %s19, 0
    %p317 = por %p315, %p316
    %p318 = scmp.ne.s32.totalorder %s307, %s310
    %p319 = scmp.eq.s32.totalorder %s24, 1
    %p320 = por %p318, %p319
    %p321 = scmp.ne.s32.totalorder %s310, %s311
    %p322 = scmp.eq.s32.totalorder %s24, 0
    %p323 = por %p321, %p322
    %p324 = scmp.ne.s32.totalorder %s310, %s311
    %p325 = scmp.eq.s32.totalorder %s25, 1
    %p326 = por %p324, %p325
    %p328 = scmp.ne.s32.totalorder %s311, %s327
    %p329 = scmp.eq.s32.totalorder %s25, 0
    %p330 = por %p328, %p329
    %p331 = scmp.le.s32.totalorder 1, %s19
    %p332 = scmp.lt.s32.totalorder %s19, 3
    %p333 = pnand %p331, %p332
    %p334 = pneg %p333
    // Predicated region
    $region9: #{conv_autoencoder_forward.1} parent=5 // pred_check
      _
    $region10: #{conv_autoencoder_forward.1} parent=5 // pred_check_branch
      %336 = sbr.rel (%p333) target = $region12
    $region11: #{conv_autoencoder_forward.1} parent=5 // pred_region
      %s337 = ssub.s32 %s19, 1
      // Predicated region
      $region13: #{conv_autoencoder_forward.1} parent=11 // pred_check
        %p338 = pneg %p66
      $region14: #{conv_autoencoder_forward.1} parent=11 // pred_check_branch
        %340 = sbr.rel (%p338) target = $region16
      $region15: #{conv_autoencoder_forward.1} parent=11 // pred_region
        _
      $region16: #{conv_autoencoder_forward.1} parent=11 // pred_fallthru
        _
      // Predicated region
      $region17: #{conv_autoencoder_forward.1} parent=11 // pred_check
        %p341 = pneg %p87
      $region18: #{conv_autoencoder_forward.1} parent=11 // pred_check_branch
        %343 = sbr.rel (%p341) target = $region20
      $region19: #{conv_autoencoder_forward.1} parent=11 // pred_region
        _
      $region20: #{conv_autoencoder_forward.1} parent=11 // pred_fallthru
        _
      // Predicated region
      $region21: #{conv_autoencoder_forward.1} parent=11 // pred_check
        %p344 = pneg %p108
      $region22: #{conv_autoencoder_forward.1} parent=11 // pred_check_branch
        %346 = sbr.rel (%p344) target = $region24
      $region23: #{conv_autoencoder_forward.1} parent=11 // pred_region
        _
      $region24: #{conv_autoencoder_forward.1} parent=11 // pred_fallthru
        _
      // Predicated region
      $region25: #{conv_autoencoder_forward.1} parent=11 // pred_check
        %p347 = pneg %p129
      $region26: #{conv_autoencoder_forward.1} parent=11 // pred_check_branch
        %349 = sbr.rel (%p347) target = $region28
      $region27: #{conv_autoencoder_forward.1} parent=11 // pred_region
        _
      $region28: #{conv_autoencoder_forward.1} parent=11 // pred_fallthru
        _
      // Predicated region
      $region29: #{conv_autoencoder_forward.1} parent=11 // pred_check
        %p350 = pneg %p150
      $region30: #{conv_autoencoder_forward.1} parent=11 // pred_check_branch
        %352 = sbr.rel (%p350) target = $region32
      $region31: #{conv_autoencoder_forward.1} parent=11 // pred_region
        _
      $region32: #{conv_autoencoder_forward.1} parent=11 // pred_fallthru
        _
      // Predicated region
      $region33: #{conv_autoencoder_forward.1} parent=11 // pred_check
        %p353 = pneg %p171
      $region34: #{conv_autoencoder_forward.1} parent=11 // pred_check_branch
        %355 = sbr.rel (%p353) target = $region36
      $region35: #{conv_autoencoder_forward.1} parent=11 // pred_region
        _
      $region36: #{conv_autoencoder_forward.1} parent=11 // pred_fallthru
        _
      // Predicated region
      $region37: #{conv_autoencoder_forward.1} parent=11 // pred_check
        %p356 = pneg %p192
      $region38: #{conv_autoencoder_forward.1} parent=11 // pred_check_branch
        %358 = sbr.rel (%p356) target = $region40
      $region39: #{conv_autoencoder_forward.1} parent=11 // pred_region
        _
      $region40: #{conv_autoencoder_forward.1} parent=11 // pred_fallthru
        _
      // Predicated region
      $region41: #{conv_autoencoder_forward.1} parent=11 // pred_check
        %p359 = pneg %p213
      $region42: #{conv_autoencoder_forward.1} parent=11 // pred_check_branch
        %361 = sbr.rel (%p359) target = $region44
      $region43: #{conv_autoencoder_forward.1} parent=11 // pred_region
        _
      $region44: #{conv_autoencoder_forward.1} parent=11 // pred_fallthru
        _
      // Predicated region
      $region45: #{conv_autoencoder_forward.1} parent=11 // pred_check
        %p362 = pneg %p234
      $region46: #{conv_autoencoder_forward.1} parent=11 // pred_check_branch
        %364 = sbr.rel (%p362) target = $region48
      $region47: #{conv_autoencoder_forward.1} parent=11 // pred_region
        _
      $region48: #{conv_autoencoder_forward.1} parent=11 // pred_fallthru
        _
      // Predicated region
      $region49: #{conv_autoencoder_forward.1} parent=11 // pred_check
        %p365 = pneg %p255
      $region50: #{conv_autoencoder_forward.1} parent=11 // pred_check_branch
        %367 = sbr.rel (%p365) target = $region52
      $region51: #{conv_autoencoder_forward.1} parent=11 // pred_region
        _
      $region52: #{conv_autoencoder_forward.1} parent=11 // pred_fallthru
        _
      // Predicated region
      $region53: #{conv_autoencoder_forward.1} parent=11 // pred_check
        %p368 = pneg %p276
      $region54: #{conv_autoencoder_forward.1} parent=11 // pred_check_branch
        %370 = sbr.rel (%p368) target = $region56
      $region55: #{conv_autoencoder_forward.1} parent=11 // pred_region
        _
      $region56: #{conv_autoencoder_forward.1} parent=11 // pred_fallthru
        _
      // Predicated region
      $region57: #{conv_autoencoder_forward.1} parent=11 // pred_check
        %p371 = pneg %p297
      $region58: #{conv_autoencoder_forward.1} parent=11 // pred_check_branch
        %373 = sbr.rel (%p371) target = $region60
      $region59: #{conv_autoencoder_forward.1} parent=11 // pred_region
        _
      $region60: #{conv_autoencoder_forward.1} parent=11 // pred_fallthru
        _
    $region12: #{conv_autoencoder_forward.1} parent=5 // pred_fallthru
      _
    %p374 = scmp.lt.s32.totalorder %s19, 2
    // Predicated region
    $region61: #{conv_autoencoder_forward.1} parent=5 // pred_check
      %p375 = pneg %p374
    $region62: #{conv_autoencoder_forward.1} parent=5 // pred_check_branch
      %377 = sbr.rel (%p375) target = $region64
    $region63: #{conv_autoencoder_forward.1} parent=5 // pred_region
      // Predicated region
      $region65: #{conv_autoencoder_forward.1} parent=63 // pred_check
        %p378 = pneg %p39
      $region66: #{conv_autoencoder_forward.1} parent=63 // pred_check_branch
        %380 = sbr.rel (%p378) target = $region68
      $region67: #{conv_autoencoder_forward.1} parent=63 // pred_region
        %s381 = smul.u32 2, %s19
        %p382 = scmp.lt.s32.totalorder %s381, 3
        %s383 = scalar_select %p382, %s381, 3
        %s384 = smul.addr %s383, 8
        %s385 = scalar_lea.vmem %s0, %s384
        %s386 = smul.u32 2, %s19
      $region68: #{conv_autoencoder_forward.1} parent=63 // pred_fallthru
        _
    $region64: #{conv_autoencoder_forward.1} parent=5 // pred_fallthru
      _
    %p387 = scmp.le.s32.totalorder 1, %s19
    %p388 = scmp.lt.s32.totalorder %s19, 3
    %p389 = pnand %p387, %p388
    %p390 = pneg %p389
    // Predicated region
    $region69: #{conv_autoencoder_forward.1} parent=5 // pred_check
      _
    $region70: #{conv_autoencoder_forward.1} parent=5 // pred_check_branch
      %392 = sbr.rel (%p389) target = $region72
    $region71: #{conv_autoencoder_forward.1} parent=5 // pred_region
      %s393 = ssub.s32 %s19, 1
      %s394 = smul.u32 2, %s24
      %p395 = scmp.lt.s32.totalorder %s394, 3
      %s396 = scalar_select %p395, %s394, 3
      %s397 = smul.addr %s396, 8
      %s398 = scalar_lea.vmem %s0, %s397
      %p399 = pneg %p45
      %p400 = pneg %p42
      %p401 = pneg %p66
      %p402 = pneg %p63
      %p403 = pneg %p87
      %p404 = pneg %p84
      %p405 = pneg %p108
      %p406 = pneg %p105
      %p407 = pneg %p129
      %p408 = pneg %p126
      %p409 = pneg %p150
      %p410 = pneg %p147
      %p411 = pneg %p171
      %p412 = pneg %p168
      %p413 = pneg %p192
      %p414 = pneg %p189
      %p415 = pneg %p213
      %p416 = pneg %p210
      %p417 = pneg %p234
      %p418 = pneg %p231
      %p419 = pneg %p255
      %p420 = pneg %p252
      %p421 = pneg %p276
      %p422 = pneg %p273
      %p423 = pneg %p297
      %p424 = pneg %p294
      %p425 = pneg %p323
      %p426 = pneg %p320
      %s427 = smul.u32 2, %s24
      %p428 = scmp.lt.s32.totalorder %s427, 3
      %s429 = scalar_select %p428, %s427, 3
      %s430 = smul.addr %s429, 4
      %s431 = scalar_lea.vmem %s13, %s430
      %s432 = smul.u32 2, %s24
      %p433 = scmp.lt.s32.totalorder %s432, 3
      %s434 = scalar_select %p433, %s432, 3
      %s435 = smul.addr %s434, 8
      %s436 = scalar_lea.vmem %s0, %s435
      %s437 = smul.u32 2, %s24
      %s438 = smul.u32 2, %s24
      %p439 = scmp.lt.s32.totalorder %s438, 3
      %s440 = scalar_select %p439, %s438, 3
      %s441 = smul.addr %s440, 4
      %s442 = scalar_lea.vmem %s13, %s441
      %s443 = smul.u32 2, %s24
      %v444 = vld [vmem:[%s436] sm:$0xff]
      %v445 = vld [vmem:[%s436 + $0x8] sm:$0xff]
      %v446 = vld [vmem:[%s1] sm:$0xff]
      %v447 = vld [vmem:[%s1 + $0x8] sm:$0xff]
      %448 = vrot.lane.b32.xlu0 %v444, 17
      %v449 = vpop.permute.xlu0 %448
      %450 = vrot.lane.b32.xlu0 %v445, 17
      %v451 = vpop.permute.xlu0 %450
      %v452 = vlaneseq
      %v453 = vand.u32 %v452, 127
      %vm454 = vcmp.lt.s32.totalorder %v453, 17
      %v455 = vsel %vm454, %v449, %v451
      %v456 = vsel %vm454, %v451, %v449
      %v457 = vld [vmem:[%s3] sm:$0x3]
      %v459 = vlaneseq
      %v460 = vshrl.u32 %v459, 7
      %v461 = vsub.s32 0, %v460
      %v462 = vrot.slane %v457, %v461
      %v463 = vlaneseq
      %v464 = vshrl.u32 %v463, 7
      %v465 = vsub.s32 1, %v464
      %v466 = vrot.slane %v457, %v465
      %v469 = vmul.f32 %v456, %v462
      %v470 = vmul.f32 %v455, %v466
      %471 = vrot.lane.b32.xlu0 %v444, 16
      %v472 = vpop.permute.xlu0 %471
      %473 = vrot.lane.b32.xlu0 %v445, 16
      %v474 = vpop.permute.xlu0 %473
      %vm475 = vcmp.lt.s32.totalorder %v453, 16
      %v476 = vsel %vm475, %v472, %v474
      %v477 = vsel %vm475, %v474, %v472
      %s478 = scalar_lea.vmem %s3, 2
      %v479 = vld [vmem:[%s478] sm:$0x3]
      %v481 = vlaneseq
      %v482 = vshrl.u32 %v481, 7
      %v483 = vsub.s32 0, %v482
      %v484 = vrot.slane %v479, %v483
      %v485 = vlaneseq
      %v486 = vshrl.u32 %v485, 7
      %v487 = vsub.s32 1, %v486
      %v488 = vrot.slane %v479, %v487
      %v491 = vmul.f32 %v477, %v484
      %v492 = vmul.f32 %v476, %v488
      %493 = vrot.lane.b32.xlu0 %v444, 15
      %v494 = vpop.permute.xlu0 %493
      %495 = vrot.lane.b32.xlu0 %v445, 15
      %v496 = vpop.permute.xlu0 %495
      %vm497 = vcmp.lt.s32.totalorder %v453, 15
      %v498 = vsel %vm497, %v494, %v496
      %v499 = vsel %vm497, %v496, %v494
      %s500 = scalar_lea.vmem %s3, 4
      %v501 = vld [vmem:[%s500] sm:$0x3]
      %v503 = vlaneseq
      %v504 = vshrl.u32 %v503, 7
      %v505 = vsub.s32 0, %v504
      %v506 = vrot.slane %v501, %v505
      %v507 = vlaneseq
      %v508 = vshrl.u32 %v507, 7
      %v509 = vsub.s32 1, %v508
      %v510 = vrot.slane %v501, %v509
      %v513 = vmul.f32 %v499, %v506
      %v514 = vmul.f32 %v498, %v510
      %515 = vrot.lane.b32.xlu0 %v444, 1
      %v516 = vpop.permute.xlu0 %515
      %517 = vrot.lane.b32.xlu0 %v445, 1
      %v518 = vpop.permute.xlu0 %517
      %vm519 = vcmp.lt.s32.totalorder %v453, 1
      %v520 = vsel %vm519, %v516, %v518
      %v521 = vsel %vm519, %v518, %v516
      %s522 = scalar_lea.vmem %s3, 6
      %v523 = vld [vmem:[%s522] sm:$0x3]
      %v525 = vlaneseq
      %v526 = vshrl.u32 %v525, 7
      %v527 = vsub.s32 0, %v526
      %v528 = vrot.slane %v523, %v527
      %v529 = vlaneseq
      %v530 = vshrl.u32 %v529, 7
      %v531 = vsub.s32 1, %v530
      %v532 = vrot.slane %v523, %v531
      %v535 = vmul.f32 %v521, %v528
      %v536 = vmul.f32 %v520, %v532
      %537 = vrot.lane.b32.xlu0 %v444, 127
      %v538 = vpop.permute.xlu0 %537
      %539 = vrot.lane.b32.xlu0 %v445, 127
      %v540 = vpop.permute.xlu0 %539
      %vm541 = vcmp.lt.s32.totalorder %v453, 127
      %v542 = vsel %vm541, %v538, %v540
      %v543 = vsel %vm541, %v540, %v538
      %s544 = scalar_lea.vmem %s3, 10
      %v545 = vld [vmem:[%s544] sm:$0x3]
      %v547 = vlaneseq
      %v548 = vshrl.u32 %v547, 7
      %v549 = vsub.s32 0, %v548
      %v550 = vrot.slane %v545, %v549
      %v551 = vlaneseq
      %v552 = vshrl.u32 %v551, 7
      %v553 = vsub.s32 1, %v552
      %v554 = vrot.slane %v545, %v553
      %v557 = vmul.f32 %v542, %v550
      %v558 = vmul.f32 %v543, %v554
      %559 = vrot.lane.b32.xlu0 %v444, 113
      %v560 = vpop.permute.xlu0 %559
      %561 = vrot.lane.b32.xlu0 %v445, 113
      %v562 = vpop.permute.xlu0 %561
      %vm563 = vcmp.lt.s32.totalorder %v453, 113
      %v564 = vsel %vm563, %v560, %v562
      %v565 = vsel %vm563, %v562, %v560
      %s566 = scalar_lea.vmem %s3, 12
      %v567 = vld [vmem:[%s566] sm:$0x3]
      %v569 = vlaneseq
      %v570 = vshrl.u32 %v569, 7
      %v571 = vsub.s32 0, %v570
      %v572 = vrot.slane %v567, %v571
      %v573 = vlaneseq
      %v574 = vshrl.u32 %v573, 7
      %v575 = vsub.s32 1, %v574
      %v576 = vrot.slane %v567, %v575
      %v579 = vmul.f32 %v564, %v572
      %v580 = vmul.f32 %v565, %v576
      %581 = vrot.lane.b32.xlu0 %v444, 112
      %v582 = vpop.permute.xlu0 %581
      %583 = vrot.lane.b32.xlu0 %v445, 112
      %v584 = vpop.permute.xlu0 %583
      %vm585 = vcmp.lt.s32.totalorder %v453, 112
      %v586 = vsel %vm585, %v582, %v584
      %v587 = vsel %vm585, %v584, %v582
      %s588 = scalar_lea.vmem %s3, 14
      %v589 = vld [vmem:[%s588] sm:$0x3]
      %v591 = vlaneseq
      %v592 = vshrl.u32 %v591, 7
      %v593 = vsub.s32 0, %v592
      %v594 = vrot.slane %v589, %v593
      %v595 = vlaneseq
      %v596 = vshrl.u32 %v595, 7
      %v597 = vsub.s32 1, %v596
      %v598 = vrot.slane %v589, %v597
      %v601 = vmul.f32 %v586, %v594
      %v602 = vmul.f32 %v587, %v598
      %603 = vrot.lane.b32.xlu0 %v444, 111
      %v604 = vpop.permute.xlu0 %603
      %605 = vrot.lane.b32.xlu0 %v445, 111
      %v606 = vpop.permute.xlu0 %605
      %vm607 = vcmp.lt.s32.totalorder %v453, 111
      %v608 = vsel %vm607, %v604, %v606
      %v609 = vsel %vm607, %v606, %v604
      %s610 = scalar_lea.vmem %s3, 16
      %v611 = vld [vmem:[%s610] sm:$0x3]
      %v613 = vlaneseq
      %v614 = vshrl.u32 %v613, 7
      %v615 = vsub.s32 0, %v614
      %v616 = vrot.slane %v611, %v615
      %v617 = vlaneseq
      %v618 = vshrl.u32 %v617, 7
      %v619 = vsub.s32 1, %v618
      %v620 = vrot.slane %v611, %v619
      %v623 = vmul.f32 %v608, %v616
      %v624 = vmul.f32 %v609, %v620
      %v625 = vld [vmem:[%s2] sm:$0xff]
      %v626 = vld [vmem:[%s2 + $0x8] sm:$0xff]
      %628 = vset.pattern.permute.xlu0 0
      %629 = vperm.xlu0 %628, %v625
      %v630 = vpop.permute.xlu0 %629
      %633 = vset.pattern.permute.xlu0 0
      %634 = vperm.xlu0 %633, %v626
      %v635 = vpop.permute.xlu0 %634
      %vm637 = vcmask 588800
      %v639 = vsel %vm637, %v446, 0
      %v642 = vsel %vm637, %v447, 0
      %644 = vmatprep.subr.mxu0 %v470
      %645 = vmatpush1.msra.mxu0 %v469
      %646 = vmatprep.subr.mxu0 %v492
      %647 = vmatpush1.msra.mxu0 %v491
      %648 = vmatprep.subr.mxu0 %v514
      %649 = vmatpush1.msra.mxu0 %v513
      %650 = vmatprep.subr.mxu0 %v536
      %651 = vmatpush1.msra.mxu0 %v535
      %652 = vmatprep.subr.mxu0 %v445
      %653 = vmatpush1.msra.mxu0 %v444
      %654 = vmatprep.subr.mxu0 %v558
      %655 = vmatpush1.msra.mxu0 %v557
      %656 = vmatprep.subr.mxu0 %v580
      %657 = vmatpush1.msra.mxu0 %v579
      %658 = vmatprep.subr.mxu0 %v602
      %659 = vmatpush1.msra.mxu0 %v601
      %660 = vmatprep.subr.mxu0 %v624
      %661 = vmatpush1.msra.mxu0 %v623
      %662 = vmatprep.subr.mxu0 0.0
      %663 = vmatpush1.msra.mxu0 0.0
      %664 = vmatprep.subr.mxu0 0.0
      %665 = vmatpush1.msra.mxu0 0.0
      %666 = vmatprep.subr.mxu0 0.0
      %667 = vmatpush1.msra.mxu0 0.0
      %668 = vmatprep.subr.mxu0 0.0
      %669 = vmatpush1.msra.mxu0 0.0
      %670 = vmatprep.subr.mxu0 0.0
      %671 = vmatpush1.msra.mxu0 0.0
      %672 = vmatprep.subr.mxu0 0.0
      %673 = vmatpush1.msra.mxu0 0.0
      %674 = vmatprep.subr.mxu0 0.0
      %675 = vmatpush1.msra.mxu0 0.0
      %676 = vmatprep.subr.mxu0 0.0
      %677 = vmatpush1.msra.mxu0 0.0
      %678 = vmatprep.subr.mxu0 0.0
      %679 = vmatpush1.msra.mxu0 0.0
      %680 = vmatprep.subr.mxu0 0.0
      %681 = vmatpush1.msra.mxu0 0.0
      %682 = vmatprep.subr.mxu0 0.0
      %683 = vmatpush1.msra.mxu0 0.0
      %684 = vmatprep.subr.mxu0 0.0
      %685 = vmatpush1.msra.mxu0 0.0
      %686 = vmatprep.subr.mxu0 0.0
      %687 = vmatpush1.msra.mxu0 0.0
      %688 = vmatprep.subr.mxu0 0.0
      %689 = vmatpush1.msra.mxu0 0.0
      %690 = vmatprep.subr.mxu0 0.0
      %691 = vmatpush1.msra.mxu0 0.0
      %692 = vmatprep.subr.mxu0 0.0
      %693 = vmatpush1.msra.mxu0 0.0
      %694 = vmatprep.subr.mxu0 0.0
      %695 = vmatpush1.msra.mxu0 0.0
      %696 = vmatprep.subr.mxu0 0.0
      %697 = vmatpush1.msra.mxu0 0.0
      %698 = vmatprep.subr.mxu0 0.0
      %699 = vmatpush1.msra.mxu0 0.0
      %700 = vmatprep.subr.mxu0 0.0
      %701 = vmatpush1.msra.mxu0 0.0
      %702 = vmatprep.subr.mxu0 0.0
      %703 = vmatpush1.msra.mxu0 0.0
      %704 = vmatprep.subr.mxu0 0.0
      %705 = vmatpush1.msra.mxu0 0.0
      %706 = vmatprep.subr.mxu0 0.0
      %707 = vmatpush1.msra.mxu0 0.0
      %708 = vmatprep.mubr.f32.mxu0 0.0
      %709 = vmatmul.mubr.f32.gmra.mrb[0].mxu0 %v639
      %v710 = vpop.f32.mrb[0].mxu0
      %v711 = vadd.f32 %v630, %v710
      %v712 = vpop.f32.mrb[0].mxu0
      %v713 = vadd.f32 %v630, %v712
      %714 = vmatprep.mubr.f32.mxu0 0.0
      %715 = vmatmul.mubr.f32.gmra.mrb[0].mxu0 %v642
      %v716 = vpop.f32.mrb[0].mxu0
      %v717 = vadd.f32 %v635, %v716
      %v718 = vpop.f32.mrb[0].mxu0
      %v719 = vadd.f32 %v635, %v718
      %720 = vdwg.mxu0
      %v721 = vmax.f32 %v711, 0.0
      %v722 = vmax.f32 %v713, 0.0
      %v723 = vmax.f32 %v717, 0.0
      %v724 = vmax.f32 %v719, 0.0
      %725 = vrot.lane.b32.xlu0 %v721, 127
      %v726 = vpop.permute.xlu0 %725
      %727 = vrot.lane.b32.xlu0 %v723, 127
      %v728 = vpop.permute.xlu0 %727
      %729 = vrot.lane.b32.xlu0 %v722, 127
      %v730 = vpop.permute.xlu0 %729
      %731 = vrot.lane.b32.xlu0 %v724, 127
      %v732 = vpop.permute.xlu0 %731
      %v733 = vsel %vm541, %v726, %v730
      %v734 = vsel %vm541, %v728, %v732
      %v735 = vsel %vm541, %v730, %v726
      %v736 = vsel %vm541, %v732, %v728
      %v737 = vmax.f32 %v721, %v733
      %v738 = vmax.f32 %v722, %v735
      %v739 = vmax.f32 %v723, %v734
      %v740 = vmax.f32 %v724, %v736
      %741 = vrot.lane.b32.xlu0 %v737, 112
      %v742 = vpop.permute.xlu0 %741
      %743 = vrot.lane.b32.xlu0 %v739, 112
      %v744 = vpop.permute.xlu0 %743
      %745 = vrot.lane.b32.xlu0 %v738, 112
      %v746 = vpop.permute.xlu0 %745
      %747 = vrot.lane.b32.xlu0 %v740, 112
      %v748 = vpop.permute.xlu0 %747
      %v749 = vsel %vm585, %v742, %v746
      %v750 = vsel %vm585, %v744, %v748
      %v751 = vsel %vm585, %v746, %v742
      %v752 = vsel %vm585, %v748, %v744
      %v753 = vmax.f32 %v737, %v749
      %v754 = vmax.f32 %v738, %v751
      %v755 = vmax.f32 %v739, %v750
      %v756 = vmax.f32 %v740, %v752
      %v757 = vld [vmem:[%s4] sm:$0xff]
      %v758 = vld [vmem:[%s4 + $0x8] sm:$0xff]
      %759 = vrot.lane.b32.xlu0 %v753, 34
      %v760 = vpop.permute.xlu0 %759
      %761 = vrot.lane.b32.xlu0 %v755, 34
      %v762 = vpop.permute.xlu0 %761
      %763 = vrot.lane.b32.xlu0 %v754, 34
      %v764 = vpop.permute.xlu0 %763
      %765 = vrot.lane.b32.xlu0 %v756, 34
      %v766 = vpop.permute.xlu0 %765
      %vm767 = vcmp.lt.s32.totalorder %v453, 34
      %v768 = vsel %vm767, %v760, %v764
      %v769 = vsel %vm767, %v762, %v766
      %v770 = vsel %vm767, %v764, %v760
      %v771 = vsel %vm767, %v766, %v762
      %v772 = vld [vmem:[%s6] sm:$0x3]
      %v774 = vlaneseq
      %v775 = vshrl.u32 %v774, 7
      %v776 = vsub.s32 0, %v775
      %v777 = vrot.slane %v772, %v776
      %v778 = vlaneseq
      %v779 = vshrl.u32 %v778, 7
      %v780 = vsub.s32 1, %v779
      %v781 = vrot.slane %v772, %v780
      %v784 = vmul.f32 %v770, %v777
      %v785 = vmul.f32 %v768, %v781
      %v786 = vmul.f32 %v771, %v777
      %v787 = vmul.f32 %v769, %v781
      %788 = vrot.lane.b32.xlu0 %v753, 32
      %v789 = vpop.permute.xlu0 %788
      %790 = vrot.lane.b32.xlu0 %v755, 32
      %v791 = vpop.permute.xlu0 %790
      %792 = vrot.lane.b32.xlu0 %v754, 32
      %v793 = vpop.permute.xlu0 %792
      %794 = vrot.lane.b32.xlu0 %v756, 32
      %v795 = vpop.permute.xlu0 %794
      %vm796 = vcmp.lt.s32.totalorder %v453, 32
      %v797 = vsel %vm796, %v789, %v793
      %v798 = vsel %vm796, %v791, %v795
      %v799 = vsel %vm796, %v793, %v789
      %v800 = vsel %vm796, %v795, %v791
      %s801 = scalar_lea.vmem %s6, 2
      %v802 = vld [vmem:[%s801] sm:$0x3]
      %v804 = vlaneseq
      %v805 = vshrl.u32 %v804, 7
      %v806 = vsub.s32 0, %v805
      %v807 = vrot.slane %v802, %v806
      %v808 = vlaneseq
      %v809 = vshrl.u32 %v808, 7
      %v810 = vsub.s32 1, %v809
      %v811 = vrot.slane %v802, %v810
      %v814 = vmul.f32 %v799, %v807
      %v815 = vmul.f32 %v797, %v811
      %v816 = vmul.f32 %v800, %v807
      %v817 = vmul.f32 %v798, %v811
      %818 = vrot.lane.b32.xlu0 %v753, 30
      %v819 = vpop.permute.xlu0 %818
      %820 = vrot.lane.b32.xlu0 %v755, 30
      %v821 = vpop.permute.xlu0 %820
      %822 = vrot.lane.b32.xlu0 %v754, 30
      %v823 = vpop.permute.xlu0 %822
      %824 = vrot.lane.b32.xlu0 %v756, 30
      %v825 = vpop.permute.xlu0 %824
      %vm826 = vcmp.lt.s32.totalorder %v453, 30
      %v827 = vsel %vm826, %v819, %v823
      %v828 = vsel %vm826, %v821, %v825
      %v829 = vsel %vm826, %v823, %v819
      %v830 = vsel %vm826, %v825, %v821
      %s831 = scalar_lea.vmem %s6, 4
      %v832 = vld [vmem:[%s831] sm:$0x3]
      %v834 = vlaneseq
      %v835 = vshrl.u32 %v834, 7
      %v836 = vsub.s32 0, %v835
      %v837 = vrot.slane %v832, %v836
      %v838 = vlaneseq
      %v839 = vshrl.u32 %v838, 7
      %v840 = vsub.s32 1, %v839
      %v841 = vrot.slane %v832, %v840
      %v844 = vmul.f32 %v829, %v837
      %v845 = vmul.f32 %v827, %v841
      %v846 = vmul.f32 %v830, %v837
      %v847 = vmul.f32 %v828, %v841
      %848 = vrot.lane.b32.xlu0 %v753, 2
      %v849 = vpop.permute.xlu0 %848
      %850 = vrot.lane.b32.xlu0 %v755, 2
      %v851 = vpop.permute.xlu0 %850
      %852 = vrot.lane.b32.xlu0 %v754, 2
      %v853 = vpop.permute.xlu0 %852
      %854 = vrot.lane.b32.xlu0 %v756, 2
      %v855 = vpop.permute.xlu0 %854
      %vm856 = vcmp.lt.s32.totalorder %v453, 2
      %v857 = vsel %vm856, %v849, %v853
      %v858 = vsel %vm856, %v851, %v855
      %v859 = vsel %vm856, %v853, %v849
      %v860 = vsel %vm856, %v855, %v851
      %s861 = scalar_lea.vmem %s6, 6
      %v862 = vld [vmem:[%s861] sm:$0x3]
      %v864 = vlaneseq
      %v865 = vshrl.u32 %v864, 7
      %v866 = vsub.s32 0, %v865
      %v867 = vrot.slane %v862, %v866
      %v868 = vlaneseq
      %v869 = vshrl.u32 %v868, 7
      %v870 = vsub.s32 1, %v869
      %v871 = vrot.slane %v862, %v870
      %v874 = vmul.f32 %v859, %v867
      %v875 = vmul.f32 %v857, %v871
      %v876 = vmul.f32 %v860, %v867
      %v877 = vmul.f32 %v858, %v871
      %878 = vrot.lane.b32.xlu0 %v753, 126
      %v879 = vpop.permute.xlu0 %878
      %880 = vrot.lane.b32.xlu0 %v755, 126
      %v881 = vpop.permute.xlu0 %880
      %882 = vrot.lane.b32.xlu0 %v754, 126
      %v883 = vpop.permute.xlu0 %882
      %884 = vrot.lane.b32.xlu0 %v756, 126
      %v885 = vpop.permute.xlu0 %884
      %vm886 = vcmp.lt.s32.totalorder %v453, 126
      %v887 = vsel %vm886, %v879, %v883
      %v888 = vsel %vm886, %v881, %v885
      %v889 = vsel %vm886, %v883, %v879
      %v890 = vsel %vm886, %v885, %v881
      %s891 = scalar_lea.vmem %s6, 10
      %v892 = vld [vmem:[%s891] sm:$0x3]
      %v894 = vlaneseq
      %v895 = vshrl.u32 %v894, 7
      %v896 = vsub.s32 0, %v895
      %v897 = vrot.slane %v892, %v896
      %v898 = vlaneseq
      %v899 = vshrl.u32 %v898, 7
      %v900 = vsub.s32 1, %v899
      %v901 = vrot.slane %v892, %v900
      %v904 = vmul.f32 %v887, %v897
      %v905 = vmul.f32 %v889, %v901
      %v906 = vmul.f32 %v888, %v897
      %v907 = vmul.f32 %v890, %v901
      %908 = vrot.lane.b32.xlu0 %v753, 98
      %v909 = vpop.permute.xlu0 %908
      %910 = vrot.lane.b32.xlu0 %v755, 98
      %v911 = vpop.permute.xlu0 %910
      %912 = vrot.lane.b32.xlu0 %v754, 98
      %v913 = vpop.permute.xlu0 %912
      %914 = vrot.lane.b32.xlu0 %v756, 98
      %v915 = vpop.permute.xlu0 %914
      %vm916 = vcmp.lt.s32.totalorder %v453, 98
      %v917 = vsel %vm916, %v909, %v913
      %v918 = vsel %vm916, %v911, %v915
      %v919 = vsel %vm916, %v913, %v909
      %v920 = vsel %vm916, %v915, %v911
      %s921 = scalar_lea.vmem %s6, 12
      %v922 = vld [vmem:[%s921] sm:$0x3]
      %v924 = vlaneseq
      %v925 = vshrl.u32 %v924, 7
      %v926 = vsub.s32 0, %v925
      %v927 = vrot.slane %v922, %v926
      %v928 = vlaneseq
      %v929 = vshrl.u32 %v928, 7
      %v930 = vsub.s32 1, %v929
      %v931 = vrot.slane %v922, %v930
      %v934 = vmul.f32 %v917, %v927
      %v935 = vmul.f32 %v919, %v931
      %v936 = vmul.f32 %v918, %v927
      %v937 = vmul.f32 %v920, %v931
      %938 = vrot.lane.b32.xlu0 %v753, 96
      %v939 = vpop.permute.xlu0 %938
      %940 = vrot.lane.b32.xlu0 %v755, 96
      %v941 = vpop.permute.xlu0 %940
      %942 = vrot.lane.b32.xlu0 %v754, 96
      %v943 = vpop.permute.xlu0 %942
      %944 = vrot.lane.b32.xlu0 %v756, 96
      %v945 = vpop.permute.xlu0 %944
      %vm946 = vcmp.lt.s32.totalorder %v453, 96
      %v947 = vsel %vm946, %v939, %v943
      %v948 = vsel %vm946, %v941, %v945
      %v949 = vsel %vm946, %v943, %v939
      %v950 = vsel %vm946, %v945, %v941
      %s951 = scalar_lea.vmem %s6, 14
      %v952 = vld [vmem:[%s951] sm:$0x3]
      %v954 = vlaneseq
      %v955 = vshrl.u32 %v954, 7
      %v956 = vsub.s32 0, %v955
      %v957 = vrot.slane %v952, %v956
      %v958 = vlaneseq
      %v959 = vshrl.u32 %v958, 7
      %v960 = vsub.s32 1, %v959
      %v961 = vrot.slane %v952, %v960
      %v964 = vmul.f32 %v947, %v957
      %v965 = vmul.f32 %v949, %v961
      %v966 = vmul.f32 %v948, %v957
      %v967 = vmul.f32 %v950, %v961
      %968 = vrot.lane.b32.xlu0 %v753, 94
      %v969 = vpop.permute.xlu0 %968
      %970 = vrot.lane.b32.xlu0 %v755, 94
      %v971 = vpop.permute.xlu0 %970
      %972 = vrot.lane.b32.xlu0 %v754, 94
      %v973 = vpop.permute.xlu0 %972
      %974 = vrot.lane.b32.xlu0 %v756, 94
      %v975 = vpop.permute.xlu0 %974
      %vm976 = vcmp.lt.s32.totalorder %v453, 94
      %v977 = vsel %vm976, %v969, %v973
      %v978 = vsel %vm976, %v971, %v975
      %v979 = vsel %vm976, %v973, %v969
      %v980 = vsel %vm976, %v975, %v971
      %s981 = scalar_lea.vmem %s6, 16
      %v982 = vld [vmem:[%s981] sm:$0x3]
      %v984 = vlaneseq
      %v985 = vshrl.u32 %v984, 7
      %v986 = vsub.s32 0, %v985
      %v987 = vrot.slane %v982, %v986
      %v988 = vlaneseq
      %v989 = vshrl.u32 %v988, 7
      %v990 = vsub.s32 1, %v989
      %v991 = vrot.slane %v982, %v990
      %v994 = vmul.f32 %v977, %v987
      %v995 = vmul.f32 %v979, %v991
      %v996 = vmul.f32 %v978, %v987
      %v997 = vmul.f32 %v980, %v991
      %v998 = vld [vmem:[%s5] sm:$0xff]
      %1000 = vset.pattern.permute.xlu0 0
      %1001 = vperm.xlu0 %1000, %v998
      %v1002 = vpop.permute.xlu0 %1001
      %vm1004 = vcmask 130048
      %v1006 = vsel %vm1004, %v758, 0
      %1008 = vmatprep.subr.mxu0 %v785
      %1009 = vmatpush1.msra.mxu0 %v784
      %1010 = vmatprep.subr.mxu0 %v787
      %1011 = vmatpush1.msra.mxu0 %v786
      %1012 = vmatprep.subr.mxu0 %v815
      %1013 = vmatpush1.msra.mxu0 %v814
      %1014 = vmatprep.subr.mxu0 %v817
      %1015 = vmatpush1.msra.mxu0 %v816
      %1016 = vmatprep.subr.mxu0 %v845
      %1017 = vmatpush1.msra.mxu0 %v844
      %1018 = vmatprep.subr.mxu0 %v847
      %1019 = vmatpush1.msra.mxu0 %v846
      %1020 = vmatprep.subr.mxu0 %v875
      %1021 = vmatpush1.msra.mxu0 %v874
      %1022 = vmatprep.subr.mxu0 %v877
      %1023 = vmatpush1.msra.mxu0 %v876
      %1024 = vmatprep.subr.mxu0 %v754
      %1025 = vmatpush1.msra.mxu0 %v753
      %1026 = vmatprep.subr.mxu0 %v756
      %1027 = vmatpush1.msra.mxu0 %v755
      %1028 = vmatprep.subr.mxu0 %v905
      %1029 = vmatpush1.msra.mxu0 %v904
      %1030 = vmatprep.subr.mxu0 %v907
      %1031 = vmatpush1.msra.mxu0 %v906
      %1032 = vmatprep.subr.mxu0 %v935
      %1033 = vmatpush1.msra.mxu0 %v934
      %1034 = vmatprep.subr.mxu0 %v937
      %1035 = vmatpush1.msra.mxu0 %v936
      %1036 = vmatprep.subr.mxu0 %v965
      %1037 = vmatpush1.msra.mxu0 %v964
      %1038 = vmatprep.subr.mxu0 %v967
      %1039 = vmatpush1.msra.mxu0 %v966
      %1040 = vmatprep.subr.mxu0 %v995
      %1041 = vmatpush1.msra.mxu0 %v994
      %1042 = vmatprep.subr.mxu0 %v997
      %1043 = vmatpush1.msra.mxu0 %v996
      %1044 = vmatprep.subr.mxu0 0.0
      %1045 = vmatpush1.msra.mxu0 0.0
      %1046 = vmatprep.subr.mxu0 0.0
      %1047 = vmatpush1.msra.mxu0 0.0
      %1048 = vmatprep.subr.mxu0 0.0
      %1049 = vmatpush1.msra.mxu0 0.0
      %1050 = vmatprep.subr.mxu0 0.0
      %1051 = vmatpush1.msra.mxu0 0.0
      %1052 = vmatprep.subr.mxu0 0.0
      %1053 = vmatpush1.msra.mxu0 0.0
      %1054 = vmatprep.subr.mxu0 0.0
      %1055 = vmatpush1.msra.mxu0 0.0
      %1056 = vmatprep.subr.mxu0 0.0
      %1057 = vmatpush1.msra.mxu0 0.0
      %1058 = vmatprep.subr.mxu0 0.0
      %1059 = vmatpush1.msra.mxu0 0.0
      %1060 = vmatprep.subr.mxu0 0.0
      %1061 = vmatpush1.msra.mxu0 0.0
      %1062 = vmatprep.subr.mxu0 0.0
      %1063 = vmatpush1.msra.mxu0 0.0
      %1064 = vmatprep.subr.mxu0 0.0
      %1065 = vmatpush1.msra.mxu0 0.0
      %1066 = vmatprep.subr.mxu0 0.0
      %1067 = vmatpush1.msra.mxu0 0.0
      %1068 = vmatprep.subr.mxu0 0.0
      %1069 = vmatpush1.msra.mxu0 0.0
      %1070 = vmatprep.subr.mxu0 0.0
      %1071 = vmatpush1.msra.mxu0 0.0
      %1072 = vmatprep.mubr.f32.mxu0 %v1006
      %1073 = vmatmul.mubr.f32.gmra.mrb[0].mxu0 %v757
      %v1074 = vpop.f32.mrb[0].mxu0
      %v1075 = vadd.f32 %v1002, %v1074
      %v1076 = vpop.f32.mrb[0].mxu0
      %v1077 = vadd.f32 %v1002, %v1076
      %1078 = vdwg.mxu0
      %v1079 = vmax.f32 %v1075, 0.0
      %v1080 = vmax.f32 %v1077, 0.0
      %1081 = vrot.lane.b32.xlu0 %v1079, 126
      %v1082 = vpop.permute.xlu0 %1081
      %1083 = vrot.lane.b32.xlu0 %v1080, 126
      %v1084 = vpop.permute.xlu0 %1083
      %v1085 = vsel %vm886, %v1082, %v1084
      %v1086 = vsel %vm886, %v1084, %v1082
      %v1087 = vmax.f32 %v1079, %v1085
      %v1088 = vmax.f32 %v1080, %v1086
      %1089 = vrot.lane.b32.xlu0 %v1087, 96
      %v1090 = vpop.permute.xlu0 %1089
      %1091 = vrot.lane.b32.xlu0 %v1088, 96
      %v1092 = vpop.permute.xlu0 %1091
      %v1093 = vsel %vm946, %v1090, %v1092
      %v1094 = vsel %vm946, %v1092, %v1090
      %v1095 = vmax.f32 %v1087, %v1093
      %v1096 = vmax.f32 %v1088, %v1094
      %v1097 = vld [vmem:[%s9] sm:$0x3]
      %v1099 = vlaneseq
      %v1100 = vshrl.u32 %v1099, 7
      %v1101 = vsub.s32 0, %v1100
      %v1102 = vrot.slane %v1097, %v1101
      %v1103 = vlaneseq
      %v1104 = vshrl.u32 %v1103, 7
      %v1105 = vsub.s32 1, %v1104
      %v1106 = vrot.slane %v1097, %v1105
      %v1109 = vmul.f32 %v1095, %v1102
      %v1110 = vmul.f32 %v1096, %v1106
      %v1111 = vld [vmem:[%s7] sm:$0xff]
      %v1112 = vld [vmem:[%s7 + $0x8] sm:$0xff]
      %1113 = vrot.lane.b32.xlu0 %v1109, 2
      %v1114 = vpop.permute.xlu0 %1113
      %1115 = vrot.lane.b32.xlu0 %v1110, 2
      %v1116 = vpop.permute.xlu0 %1115
      %v1117 = vsel %vm856, %v1114, %v1116
      %v1118 = vsel %vm856, %v1116, %v1114
      %1119 = vrot.lane.b32.xlu0 %v1109, 32
      %v1120 = vpop.permute.xlu0 %1119
      %1121 = vrot.lane.b32.xlu0 %v1110, 32
      %v1122 = vpop.permute.xlu0 %1121
      %v1123 = vsel %vm796, %v1120, %v1122
      %v1124 = vsel %vm796, %v1122, %v1120
      %1125 = vrot.lane.b32.xlu0 %v1109, 34
      %v1126 = vpop.permute.xlu0 %1125
      %1127 = vrot.lane.b32.xlu0 %v1110, 34
      %v1128 = vpop.permute.xlu0 %1127
      %v1129 = vsel %vm767, %v1126, %v1128
      %v1130 = vsel %vm767, %v1128, %v1126
      %v1131 = vld [vmem:[%s8] sm:$0xff]
      %v1132 = vld [vmem:[%s8 + $0x8] sm:$0xff]
      %1134 = vset.pattern.permute.xlu0 0
      %1135 = vperm.xlu0 %1134, %v1131
      %v1136 = vpop.permute.xlu0 %1135
      %1139 = vset.pattern.permute.xlu0 0
      %1140 = vperm.xlu0 %1139, %v1132
      %v1141 = vpop.permute.xlu0 %1140
      %vm1143 = vcmask 261120
      %v1145 = vsel %vm1143, %v1111, 0
      %v1148 = vsel %vm1143, %v1112, 0
      %1150 = vmatprep.subr.mxu0 %v1110
      %1151 = vmatpush1.msra.mxu0 %v1109
      %1152 = vmatprep.subr.mxu0 %v1117
      %1153 = vmatpush1.msra.mxu0 %v1118
      %1154 = vmatprep.subr.mxu0 %v1123
      %1155 = vmatpush1.msra.mxu0 %v1124
      %1156 = vmatprep.subr.mxu0 %v1129
      %1157 = vmatpush1.msra.mxu0 %v1130
      %1158 = vmatprep.subr.mxu0 0.0
      %1159 = vmatpush1.msra.mxu0 0.0
      %1160 = vmatprep.subr.mxu0 0.0
      %1161 = vmatpush1.msra.mxu0 0.0
      %1162 = vmatprep.subr.mxu0 0.0
      %1163 = vmatpush1.msra.mxu0 0.0
      %1164 = vmatprep.subr.mxu0 0.0
      %1165 = vmatpush1.msra.mxu0 0.0
      %1166 = vmatprep.subr.mxu0 0.0
      %1167 = vmatpush1.msra.mxu0 0.0
      %1168 = vmatprep.subr.mxu0 0.0
      %1169 = vmatpush1.msra.mxu0 0.0
      %1170 = vmatprep.subr.mxu0 0.0
      %1171 = vmatpush1.msra.mxu0 0.0
      %1172 = vmatprep.subr.mxu0 0.0
      %1173 = vmatpush1.msra.mxu0 0.0
      %1174 = vmatprep.subr.mxu0 0.0
      %1175 = vmatpush1.msra.mxu0 0.0
      %1176 = vmatprep.subr.mxu0 0.0
      %1177 = vmatpush1.msra.mxu0 0.0
      %1178 = vmatprep.subr.mxu0 0.0
      %1179 = vmatpush1.msra.mxu0 0.0
      %1180 = vmatprep.subr.mxu0 0.0
      %1181 = vmatpush1.msra.mxu0 0.0
      %1182 = vmatprep.subr.mxu0 0.0
      %1183 = vmatpush1.msra.mxu0 0.0
      %1184 = vmatprep.subr.mxu0 0.0
      %1185 = vmatpush1.msra.mxu0 0.0
      %1186 = vmatprep.subr.mxu0 0.0
      %1187 = vmatpush1.msra.mxu0 0.0
      %1188 = vmatprep.subr.mxu0 0.0
      %1189 = vmatpush1.msra.mxu0 0.0
      %1190 = vmatprep.subr.mxu0 0.0
      %1191 = vmatpush1.msra.mxu0 0.0
      %1192 = vmatprep.subr.mxu0 0.0
      %1193 = vmatpush1.msra.mxu0 0.0
      %1194 = vmatprep.subr.mxu0 0.0
      %1195 = vmatpush1.msra.mxu0 0.0
      %1196 = vmatprep.subr.mxu0 0.0
      %1197 = vmatpush1.msra.mxu0 0.0
      %1198 = vmatprep.subr.mxu0 0.0
      %1199 = vmatpush1.msra.mxu0 0.0
      %1200 = vmatprep.subr.mxu0 0.0
      %1201 = vmatpush1.msra.mxu0 0.0
      %1202 = vmatprep.subr.mxu0 0.0
      %1203 = vmatpush1.msra.mxu0 0.0
      %1204 = vmatprep.subr.mxu0 0.0
      %1205 = vmatpush1.msra.mxu0 0.0
      %1206 = vmatprep.subr.mxu0 0.0
      %1207 = vmatpush1.msra.mxu0 0.0
      %1208 = vmatprep.subr.mxu0 0.0
      %1209 = vmatpush1.msra.mxu0 0.0
      %1210 = vmatprep.subr.mxu0 0.0
      %1211 = vmatpush1.msra.mxu0 0.0
      %1212 = vmatprep.subr.mxu0 0.0
      %1213 = vmatpush1.msra.mxu0 0.0
      %1214 = vmatprep.mubr.f32.mxu0 0.0
      %1215 = vmatmul.mubr.f32.gmra.mrb[0].mxu0 %v1145
      %v1216 = vpop.f32.mrb[0].mxu0
      %v1217 = vadd.f32 %v1136, %v1216
      %v1218 = vpop.f32.mrb[0].mxu0
      %v1219 = vadd.f32 %v1136, %v1218
      %1220 = vmatprep.mubr.f32.mxu0 0.0
      %1221 = vmatmul.mubr.f32.gmra.mrb[0].mxu0 %v1148
      %v1222 = vpop.f32.mrb[0].mxu0
      %v1223 = vadd.f32 %v1141, %v1222
      %v1224 = vpop.f32.mrb[0].mxu0
      %v1225 = vadd.f32 %v1141, %v1224
      %1226 = vdwg.mxu0
      %v1227 = vmax.f32 %v1217, 0.0
      %v1228 = vmax.f32 %v1219, 0.0
      %v1229 = vmax.f32 %v1223, 0.0
      %v1230 = vmax.f32 %v1225, 0.0
      %v1231 = vld [vmem:[%s12] sm:$0x3]
      %v1233 = vlaneseq
      %v1234 = vshrl.u32 %v1233, 7
      %v1235 = vsub.s32 0, %v1234
      %v1236 = vrot.slane %v1231, %v1235
      %v1237 = vlaneseq
      %v1238 = vshrl.u32 %v1237, 7
      %v1239 = vsub.s32 1, %v1238
      %v1240 = vrot.slane %v1231, %v1239
      %v1243 = vmul.f32 %v1227, %v1236
      %v1244 = vmul.f32 %v1228, %v1240
      %v1245 = vmul.f32 %v1229, %v1236
      %v1246 = vmul.f32 %v1230, %v1240
      %v1247 = vld [vmem:[%s10] sm:$0x7]
      %1248 = vrot.lane.b32.xlu0 %v1243, 1
      %v1249 = vpop.permute.xlu0 %1248
      %1250 = vrot.lane.b32.xlu0 %v1245, 1
      %v1251 = vpop.permute.xlu0 %1250
      %1252 = vrot.lane.b32.xlu0 %v1244, 1
      %v1253 = vpop.permute.xlu0 %1252
      %1254 = vrot.lane.b32.xlu0 %v1246, 1
      %v1255 = vpop.permute.xlu0 %1254
      %v1256 = vsel %vm519, %v1249, %v1253
      %v1257 = vsel %vm519, %v1251, %v1255
      %v1258 = vsel %vm519, %v1253, %v1249
      %v1259 = vsel %vm519, %v1255, %v1251
      %1260 = vrot.lane.b32.xlu0 %v1243, 16
      %v1261 = vpop.permute.xlu0 %1260
      %1262 = vrot.lane.b32.xlu0 %v1245, 16
      %v1263 = vpop.permute.xlu0 %1262
      %1264 = vrot.lane.b32.xlu0 %v1244, 16
      %v1265 = vpop.permute.xlu0 %1264
      %1266 = vrot.lane.b32.xlu0 %v1246, 16
      %v1267 = vpop.permute.xlu0 %1266
      %v1268 = vsel %vm475, %v1261, %v1265
      %v1269 = vsel %vm475, %v1263, %v1267
      %v1270 = vsel %vm475, %v1265, %v1261
      %v1271 = vsel %vm475, %v1267, %v1263
      %1272 = vrot.lane.b32.xlu0 %v1243, 17
      %v1273 = vpop.permute.xlu0 %1272
      %1274 = vrot.lane.b32.xlu0 %v1245, 17
      %v1275 = vpop.permute.xlu0 %1274
      %1276 = vrot.lane.b32.xlu0 %v1244, 17
      %v1277 = vpop.permute.xlu0 %1276
      %1278 = vrot.lane.b32.xlu0 %v1246, 17
      %v1279 = vpop.permute.xlu0 %1278
      %v1280 = vsel %vm454, %v1273, %v1277
      %v1281 = vsel %vm454, %v1275, %v1279
      %v1282 = vsel %vm454, %v1277, %v1273
      %v1283 = vsel %vm454, %v1279, %v1275
      %v1284 = vld [vmem:[%s11] sm:$0x7]
      %1286 = vset.pattern.permute.xlu0 0
      %1287 = vperm.xlu0 %1286, %v1284
      %v1288 = vpop.permute.xlu0 %1287
      %vm1290 = vcmask 523264
      %v1292 = vsel %vm1290, %v1247, 0
      %1294 = vmatprep.subr.mxu0 %v1244
      %1295 = vmatpush1.msra.mxu0 %v1243
      %1296 = vmatprep.subr.mxu0 %v1246
      %1297 = vmatpush1.msra.mxu0 %v1245
      %1298 = vmatprep.subr.mxu0 %v1256
      %1299 = vmatpush1.msra.mxu0 %v1258
      %1300 = vmatprep.subr.mxu0 %v1257
      %1301 = vmatpush1.msra.mxu0 %v1259
      %1302 = vmatprep.subr.mxu0 %v1268
      %1303 = vmatpush1.msra.mxu0 %v1270
      %1304 = vmatprep.subr.mxu0 %v1269
      %1305 = vmatpush1.msra.mxu0 %v1271
      %1306 = vmatprep.subr.mxu0 %v1280
      %1307 = vmatpush1.msra.mxu0 %v1282
      %1308 = vmatprep.subr.mxu0 %v1281
      %1309 = vmatpush1.msra.mxu0 %v1283
      %1310 = vmatprep.subr.mxu0 0.0
      %1311 = vmatpush1.msra.mxu0 0.0
      %1312 = vmatprep.subr.mxu0 0.0
      %1313 = vmatpush1.msra.mxu0 0.0
      %1314 = vmatprep.subr.mxu0 0.0
      %1315 = vmatpush1.msra.mxu0 0.0
      %1316 = vmatprep.subr.mxu0 0.0
      %1317 = vmatpush1.msra.mxu0 0.0
      %1318 = vmatprep.subr.mxu0 0.0
      %1319 = vmatpush1.msra.mxu0 0.0
      %1320 = vmatprep.subr.mxu0 0.0
      %1321 = vmatpush1.msra.mxu0 0.0
      %1322 = vmatprep.subr.mxu0 0.0
      %1323 = vmatpush1.msra.mxu0 0.0
      %1324 = vmatprep.subr.mxu0 0.0
      %1325 = vmatpush1.msra.mxu0 0.0
      %1326 = vmatprep.subr.mxu0 0.0
      %1327 = vmatpush1.msra.mxu0 0.0
      %1328 = vmatprep.subr.mxu0 0.0
      %1329 = vmatpush1.msra.mxu0 0.0
      %1330 = vmatprep.subr.mxu0 0.0
      %1331 = vmatpush1.msra.mxu0 0.0
      %1332 = vmatprep.subr.mxu0 0.0
      %1333 = vmatpush1.msra.mxu0 0.0
      %1334 = vmatprep.subr.mxu0 0.0
      %1335 = vmatpush1.msra.mxu0 0.0
      %1336 = vmatprep.subr.mxu0 0.0
      %1337 = vmatpush1.msra.mxu0 0.0
      %1338 = vmatprep.subr.mxu0 0.0
      %1339 = vmatpush1.msra.mxu0 0.0
      %1340 = vmatprep.subr.mxu0 0.0
      %1341 = vmatpush1.msra.mxu0 0.0
      %1342 = vmatprep.subr.mxu0 0.0
      %1343 = vmatpush1.msra.mxu0 0.0
      %1344 = vmatprep.subr.mxu0 0.0
      %1345 = vmatpush1.msra.mxu0 0.0
      %1346 = vmatprep.subr.mxu0 0.0
      %1347 = vmatpush1.msra.mxu0 0.0
      %1348 = vmatprep.subr.mxu0 0.0
      %1349 = vmatpush1.msra.mxu0 0.0
      %1350 = vmatprep.subr.mxu0 0.0
      %1351 = vmatpush1.msra.mxu0 0.0
      %1352 = vmatprep.subr.mxu0 0.0
      %1353 = vmatpush1.msra.mxu0 0.0
      %1354 = vmatprep.subr.mxu0 0.0
      %1355 = vmatpush1.msra.mxu0 0.0
      %1356 = vmatprep.subr.mxu0 0.0
      %1357 = vmatpush1.msra.mxu0 0.0
      %1358 = vmatprep.mubr.f32.mxu0 0.0
      %1359 = vmatmul.mubr.f32.gmra.mrb[0].mxu0 %v1292
      %v1360 = vpop.f32.mrb[0].mxu0
      %v1361 = vadd.f32 %v1288, %v1360
      %v1362 = vpop.f32.mrb[0].mxu0
      %v1363 = vadd.f32 %v1288, %v1362
      %1364 = vdwg.mxu0
      %v1365 = vsub.f32 0.0, %v1361
      %v1366 = vsub.f32 0.0, %v1363
      %v1367 = vmul.f32 %v1365, 1.442695
      %v1368 = vpow.pop %v1367
      %v1369 = vmul.f32 %v1366, 1.442695
      %v1370 = vpow.pop %v1369
      %v1371 = vadd.f32 %v1368, 1.0
      %v1372 = vadd.f32 %v1370, 1.0
      %v1373 = vrcp.pop %v1371
      %v1374 = vrcp.pop %v1372
      %v1377 = vcombine.low %v1373, %v1374
      %1379 = vst [vmem:[%s442] sm:$0x77] %v1377
      %s1380 = smul.u32 2, %s24
      %p1381 = scmp.lt.s32.totalorder %s1380, 3
      %s1382 = scalar_select %p1381, %s1380, 3
      %s1383 = smul.addr %s1382, 4
      %s1384 = scalar_lea.vmem %s13, %s1383
      // Predicated region
      $region73: #{conv_autoencoder_forward.1} parent=71 // pred_check
        %p1385 = pneg %p320
      $region74: #{conv_autoencoder_forward.1} parent=71 // pred_check_branch
        %1387 = sbr.rel (%p1385) target = $region76
      $region75: #{conv_autoencoder_forward.1} parent=71 // pred_region
        %s1388 = smul.u32 2, %s24
      $region76: #{conv_autoencoder_forward.1} parent=71 // pred_fallthru
        _
    $region72: #{conv_autoencoder_forward.1} parent=5 // pred_fallthru
      _
    %p1389 = scmp.le.s32.totalorder 2, %s19
    // Predicated region
    $region77: #{conv_autoencoder_forward.1} parent=5 // pred_check
      %p1390 = pneg %p1389
    $region78: #{conv_autoencoder_forward.1} parent=5 // pred_check_branch
      %1392 = sbr.rel (%p1390) target = $region80
    $region79: #{conv_autoencoder_forward.1} parent=5 // pred_region
      %s1393 = ssub.s32 %s19, 2
      // Predicated region
      $region81: #{conv_autoencoder_forward.1} parent=79 // pred_check
        %p1394 = pneg %p326
      $region82: #{conv_autoencoder_forward.1} parent=79 // pred_check_branch
        %1396 = sbr.rel (%p1394) target = $region84
      $region83: #{conv_autoencoder_forward.1} parent=79 // pred_region
        %s1397 = smul.u32 2, %s25
        %p1398 = scmp.lt.s32.totalorder %s1397, 3
        %s1399 = scalar_select %p1398, %s1397, 3
        %s1400 = smul.addr %s1399, 4
        %s1401 = scalar_lea.vmem %s13, %s1400
      $region84: #{conv_autoencoder_forward.1} parent=79 // pred_fallthru
        _
    $region80: #{conv_autoencoder_forward.1} parent=5 // pred_fallthru
      _
  $region6: #{conv_autoencoder_forward.1} parent=0 // loop_footer
    %s23 = sadd.s32 1, %s19
  $region7: #{conv_autoencoder_forward.1} parent=0 // loop_footer_branch
    %18 = sbr.rel target = $region3
  $region8: #{conv_autoencoder_forward.1} parent=0 // loop_exit
    _

</llo_original>
